<compile_context>
chip_gen: v6e
topology: v6e:2x2x1
jax: 0.10.0
libtpu: 0.0.40
codegen_flags: <defaults>
</compile_context>

<pallas_src>
import math
import functools

import jax
import jax.numpy as jnp
from jax.experimental import pallas as pl
from jax.experimental.pallas import tpu as pltpu


def bertsum_attention_kernel(data_ref, bias_ref,
                             wqkv_ref, bqkv_ref,
                             wo_ref, bo_ref,
                             out_ref,
                             ctx_ref,
                             *, num_heads, head_dim):
    x = data_ref[0]                     # (S, H), compute dtype (no forced upcast)
    S, H = x.shape
    cdt = x.dtype

    # Fused QKV projection (one (S,H) x (H,3H) MXU matmul, f32 accumulation).
    qkv = jnp.dot(x, wqkv_ref[...], preferred_element_type=jnp.float32)
    qkv = (qkv + bqkv_ref[0].astype(jnp.float32)).astype(cdt)        # (S, 3H)

    # Precomputed additive mask bias: 0 where visible, -1e18 where masked.
    bias = bias_ref[0].astype(jnp.float32)                            # (S, S)

    # Per-head loop with static lane slices: no transposes, and only one
    # (S, S) score tensor live at a time instead of (nh, S, S).
    for h in range(num_heads):
        lo = h * head_dim
        q_h = qkv[:, lo:lo + head_dim]               # scale already folded into wq
        k_h = qkv[:, H + lo:H + lo + head_dim]
        v_h = qkv[:, 2 * H + lo:2 * H + lo + head_dim]

        s = jnp.einsum('qd,kd->qk', q_h, k_h,
                       preferred_element_type=jnp.float32) + bias     # (S, S) f32

        # Numerically-stable softmax, kept in f32.
        s = s - jnp.max(s, axis=-1, keepdims=True)
        p = jnp.exp(s)
        inv = pl.reciprocal(jnp.sum(p, axis=-1, keepdims=True), approx=True)
        attn = (p * inv).astype(cdt)                 # probs fed to MXU in compute dtype

        # TODO(synk): dropout on attn is identity here (inference mode).

        ctx_h = jnp.dot(attn, v_h, preferred_element_type=jnp.float32)
        ctx_ref[:, lo:lo + head_dim] = ctx_h.astype(ctx_ref.dtype)

    # Final output projection on the assembled (S, H) context.
    out = jnp.dot(ctx_ref[...], wo_ref[...], preferred_element_type=jnp.float32)
    out = out + bo_ref[0].astype(jnp.float32)
    out_ref[0] = out.astype(out_ref.dtype)


def fuse_params(params, *, num_heads, dtype):
    """One-time parameter setup: fuse QKV and fold in the 1/sqrt(dh) scale."""
    wq, bq, wk, bk, wv, bv, wo, bo = params
    head_dim = wq.shape[1] // num_heads
    scale = 1.0 / math.sqrt(head_dim)
    wqkv = jnp.concatenate([wq * scale, wk, wv], axis=1).astype(dtype)   # (H, 3H)
    bqkv = jnp.concatenate([bq * scale, bk, bv], axis=1).astype(dtype)   # (1, 3H)
    return wqkv, bqkv, wo.astype(dtype), bo.astype(dtype)


def _vmem_limit_bytes(S, H, itemsize):
    weights = (4 * H * H + 4 * H) * itemsize                 # resident, single-buffered
    blocks = 2 * (2 * S * H + S * S) * itemsize              # double-buffered data/out + mask blocks
    interm = 4 * S * H * 4 + 3 * S * S * 4 + S * H * itemsize  # qkv(f32), per-head scores, ctx scratch
    est = weights + blocks + interm
    return int(min(96 * 2 ** 20, max(32 * 2 ** 20, 2 * est)))


def _make_call(B, S, H, num_heads, head_dim, cdt, single_buffer_weights):
    const_kwargs = {}
    if single_buffer_weights:
        # Constant-index weight/bias blocks don't need double buffering.
        const_kwargs["pipeline_mode"] = pl.Buffered(1)

    wqkv_spec = pl.BlockSpec((H, 3 * H), lambda b: (0, 0), **const_kwargs)
    bqkv_spec = pl.BlockSpec((1, 3 * H), lambda b: (0, 0), **const_kwargs)
    wo_spec = pl.BlockSpec((H, H), lambda b: (0, 0), **const_kwargs)
    bo_spec = pl.BlockSpec((1, H), lambda b: (0, 0), **const_kwargs)

    kernel = functools.partial(bertsum_attention_kernel,
                               num_heads=num_heads, head_dim=head_dim)

    itemsize = jnp.dtype(cdt).itemsize
    flops = B * (8 * S * H * H + 4 * S * S * H)
    transcendentals = B * num_heads * S * S
    bytes_accessed = itemsize * (2 * B * S * H + B * S * S + 4 * H * H + 4 * H)

    return pl.pallas_call(
        kernel,
        out_shape=jax.ShapeDtypeStruct((B, S, H), cdt),
        grid_spec=pltpu.PrefetchScalarGridSpec(
            num_scalar_prefetch=0,
            grid=(B,),
            in_specs=[
                pl.BlockSpec((1, S, H), lambda b: (b, 0, 0)),   # data
                pl.BlockSpec((1, S, S), lambda b: (b, 0, 0)),   # additive mask bias
                wqkv_spec, bqkv_spec,                           # fused QKV
                wo_spec, bo_spec,                               # final linear
            ],
            out_specs=pl.BlockSpec((1, S, H), lambda b: (b, 0, 0)),
            scratch_shapes=[pltpu.VMEM((S, H), cdt)],           # per-batch context
        ),
        compiler_params=pltpu.CompilerParams(
            dimension_semantics=("parallel",),
            vmem_limit_bytes=_vmem_limit_bytes(S, H, itemsize),
        ),
        cost_estimate=pl.CostEstimate(flops=flops,
                                      transcendentals=transcendentals,
                                      bytes_accessed=bytes_accessed),
    )


def bertsum_attention(data, mask, fused_params, *, num_heads):
    B, S, H = data.shape
    assert H % num_heads == 0, "hidden size must be divisible by num_heads"
    head_dim = H // num_heads
    wqkv, bqkv, wo, bo = fused_params
    cdt = data.dtype

    # Additive mask bias (1 => masked -> -1e18), compute dtype instead of int32.
    mask_bias = jnp.where(mask != 0, jnp.float32(-1e18), jnp.float32(0.0)).astype(cdt)

    args = (data, mask_bias, wqkv, bqkv, wo, bo)
    try:
        return _make_call(B, S, H, num_heads, head_dim, cdt, True)(*args)
    except Exception:
        # Some JAX versions reject single-buffered pipeline_mode; fall back to the
        # default (double-buffered) weight blocks — identical results.
        return _make_call(B, S, H, num_heads, head_dim, cdt, False)(*args)


def reference_attention(data, mask, params, *, num_heads):
    """Plain-JAX reference mirroring the PyTorch forward (eval mode), all f32."""
    B, S, H = data.shape
    dh = H // num_heads
    wq, bq, wk, bk, wv, bv, wo, bo = params

    def shape(x):
        return x.reshape(B, S, num_heads, dh).transpose(0, 2, 1, 3)

    q = shape(data @ wq + bq[0]) / math.sqrt(dh)
    k = shape(data @ wk + bk[0])
    v = shape(data @ wv + bv[0])
    scores = jnp.einsum('bhqd,bhkd->bhqk', q, k)
    scores = jnp.where(mask[:, None, :, :] != 0, -1e18, scores)
    scores = scores - jnp.max(scores, axis=-1, keepdims=True)
    p = jnp.exp(scores)
    attn = p / jnp.sum(p, axis=-1, keepdims=True)
    ctx = jnp.einsum('bhqk,bhkd->bhqd', attn, v)
    ctx = ctx.transpose(0, 2, 1, 3).reshape(B, S, H)
    return ctx @ wo + bo[0]


if __name__ == "__main__":
    B, S, H = 2, 8, 32
    num_heads = 4

    key = jax.random.PRNGKey(0)
    keys = jax.random.split(key, 12)

    data = jax.random.normal(keys[0], (B, S, H), dtype=jnp.float32)
    # mask: 1 => masked position; deterministic random pattern, diagonal kept
    # unmasked so no row is fully masked.
    rand_mask = (jax.random.uniform(keys[1], (B, S, S)) < 0.3)
    eye = jnp.eye(S, dtype=bool)[None, :, :]
    mask = jnp.where(eye, False, rand_mask).astype(jnp.int32)

    def init_linear(kw, kb, fan_in, fan_out):
        bound = 1.0 / math.sqrt(fan_in)
        w = jax.random.uniform(kw, (fan_in, fan_out), minval=-bound, maxval=bound,
                               dtype=jnp.float32)
        b = jax.random.uniform(kb, (1, fan_out), minval=-bound, maxval=bound,
                               dtype=jnp.float32)
        return w, b

    wq, bq = init_linear(keys[2], keys[3], H, H)
    wk, bk = init_linear(keys[4], keys[5], H, H)
    wv, bv = init_linear(keys[6], keys[7], H, H)
    wo, bo = init_linear(keys[8], keys[9], H, H)
    params = (wq, bq, wk, bk, wv, bv, wo, bo)

    ref = reference_attention(data, mask, params, num_heads=num_heads)

    # --- f32 path (exact semantics check; approx reciprocal => slightly looser tol) ---
    fused_f32 = fuse_params(params, num_heads=num_heads, dtype=jnp.float32)
    out = bertsum_attention(data, mask, fused_f32, num_heads=num_heads)
    out = jax.block_until_ready(out)
    assert out.shape == (B, S, H)
    assert jnp.allclose(out, ref, atol=1e-2, rtol=1e-2), "f32 mismatch vs reference"

    # --- bf16 path (fast MXU operands on v6e/v7x; f32 accumulation + f32 softmax) ---
    fused_bf16 = fuse_params(params, num_heads=num_heads, dtype=jnp.bfloat16)
    out_bf16 = bertsum_attention(data.astype(jnp.bfloat16), mask, fused_bf16,
                                 num_heads=num_heads)
    out_bf16 = jax.block_until_ready(out_bf16)
    assert out_bf16.shape == (B, S, H)
    assert jnp.allclose(out_bf16.astype(jnp.float32), ref, atol=2e-1, rtol=2e-1), \
        "bf16 mismatch vs reference"

    print("KERNEL_OK")
</pallas_src>

<mosaic_0001>
module attributes {stable_mosaic.version = 11 : i64} {
  func.func @bertsum_attention_kernel(%arg0: i32, %arg1: memref<1x8x32xf32, #tpu.memory_space<vmem>>, %arg2: memref<1x8x8xf32, #tpu.memory_space<vmem>>, %arg3: memref<32x96xf32, #tpu.memory_space<vmem>>, %arg4: memref<1x96xf32, #tpu.memory_space<vmem>>, %arg5: memref<32x32xf32, #tpu.memory_space<vmem>>, %arg6: memref<1x32xf32, #tpu.memory_space<vmem>>, %arg7: memref<1x8x32xf32, #tpu.memory_space<vmem>>, %arg8: memref<8x32xf32, #tpu.memory_space<vmem>>) attributes {dimension_semantics = [#tpu.dimension_semantics<parallel>], iteration_bounds = array<i64: 2>, scalar_prefetch = 0 : i64, scratch_operands = 1 : i64, tpu.core_type = #tpu.core_type<tc>, window_params = [{transform_indices = @transform_0, window_bounds = array<i64: 1, 8, 32>}, {transform_indices = @transform_1, window_bounds = array<i64: 1, 8, 8>}, {pipeline_mode = #tpu.pipeline_mode<synchronous>, transform_indices = @transform_2, window_bounds = array<i64: 32, 96>}, {pipeline_mode = #tpu.pipeline_mode<synchronous>, transform_indices = @transform_3, window_bounds = array<i64: 1, 96>}, {pipeline_mode = #tpu.pipeline_mode<synchronous>, transform_indices = @transform_4, window_bounds = array<i64: 32, 32>}, {pipeline_mode = #tpu.pipeline_mode<synchronous>, transform_indices = @transform_5, window_bounds = array<i64: 1, 32>}, {transform_indices = @transform_6, window_bounds = array<i64: 1, 8, 32>}]} {
    %c0 = arith.constant 0 : index
    %c0_0 = arith.constant 0 : index
    %c0_1 = arith.constant 0 : index
    %0 = vector.load %arg1[%c0, %c0_0, %c0_1] : memref<1x8x32xf32, #tpu.memory_space<vmem>>, vector<1x8x32xf32>
    %1 = vector.shape_cast %0 : vector<1x8x32xf32> to vector<8x32xf32>
    %c0_2 = arith.constant 0 : index
    %c0_3 = arith.constant 0 : index
    %2 = vector.load %arg3[%c0_2, %c0_3] : memref<32x96xf32, #tpu.memory_space<vmem>>, vector<32x96xf32>
    %cst = arith.constant dense<0.000000e+00> : vector<8x96xf32>
    %3 = tpu.matmul %1, %2, %cst {dimension_numbers = #tpu.dot_dimension_numbers<[1], [0], [0], [1], [0, 0, 1, 1], [], []>} : vector<8x32xf32>, vector<32x96xf32>, vector<8x96xf32> -> vector<8x96xf32>
    %c0_4 = arith.constant 0 : index
    %c0_5 = arith.constant 0 : index
    %4 = vector.load %arg4[%c0_4, %c0_5] : memref<1x96xf32, #tpu.memory_space<vmem>>, vector<1x96xf32>
    %5 = vector.shape_cast %4 : vector<1x96xf32> to vector<96xf32>
    %6 = vector.shape_cast %5 : vector<96xf32> to vector<1x96xf32>
    %7 = vector.broadcast %6 : vector<1x96xf32> to vector<8x96xf32>
    %8 = arith.addf %3, %7 : vector<8x96xf32>
    %c0_6 = arith.constant 0 : index
    %c0_7 = arith.constant 0 : index
    %c0_8 = arith.constant 0 : index
    %9 = vector.load %arg2[%c0_6, %c0_7, %c0_8] : memref<1x8x8xf32, #tpu.memory_space<vmem>>, vector<1x8x8xf32>
    %10 = vector.shape_cast %9 : vector<1x8x8xf32> to vector<8x8xf32>
    %11 = vector.extract_strided_slice %8 {offsets = [0, 0], sizes = [8, 8], strides = [1, 1]} : vector<8x96xf32> to vector<8x8xf32>
    %12 = vector.extract_strided_slice %8 {offsets = [0, 32], sizes = [8, 8], strides = [1, 1]} : vector<8x96xf32> to vector<8x8xf32>
    %13 = vector.extract_strided_slice %8 {offsets = [0, 64], sizes = [8, 8], strides = [1, 1]} : vector<8x96xf32> to vector<8x8xf32>
    "tpu.trace_start"() <{level = 10 : i32, message = "qd,kd->qk"}> : () -> ()
    %cst_9 = arith.constant dense<0.000000e+00> : vector<8x8xf32>
    %14 = tpu.matmul %11, %12, %cst_9 {dimension_numbers = #tpu.dot_dimension_numbers<[1], [1], [0], [0], [0, 0, 1, 0], [], []>} : vector<8x8xf32>, vector<8x8xf32>, vector<8x8xf32> -> vector<8x8xf32>
    "tpu.trace_stop"() : () -> ()
    %15 = arith.addf %14, %10 : vector<8x8xf32>
    %cst_10 = arith.constant dense<0xFF800000> : vector<8xf32>
    %16 = vector.multi_reduction <maximumf>, %15, %cst_10 [1] : vector<8x8xf32> to vector<8xf32>
    %17 = vector.shape_cast %16 : vector<8xf32> to vector<8x1xf32>
    %18 = vector.broadcast %17 : vector<8x1xf32> to vector<8x8xf32>
    %19 = arith.subf %15, %18 : vector<8x8xf32>
    %20 = math.exp %19 : vector<8x8xf32>
    %cst_11 = arith.constant dense<0.000000e+00> : vector<8xf32>
    %21 = vector.multi_reduction <add>, %20, %cst_11 [1] : vector<8x8xf32> to vector<8xf32>
    %22 = vector.shape_cast %21 : vector<8xf32> to vector<8x1xf32>
    %23 = tpu.reciprocal %22 {approx = true} : vector<8x1xf32> -> vector<8x1xf32>
    %24 = vector.broadcast %23 : vector<8x1xf32> to vector<8x8xf32>
    %25 = arith.mulf %20, %24 : vector<8x8xf32>
    %cst_12 = arith.constant dense<0.000000e+00> : vector<8x8xf32>
    %26 = tpu.matmul %25, %13, %cst_12 {dimension_numbers = #tpu.dot_dimension_numbers<[1], [0], [0], [1], [0, 0, 1, 1], [], []>} : vector<8x8xf32>, vector<8x8xf32>, vector<8x8xf32> -> vector<8x8xf32>
    %c0_13 = arith.constant 0 : index
    %c0_14 = arith.constant 0 : index
    %27 = vector.load %arg8[%c0_13, %c0_14] : memref<8x32xf32, #tpu.memory_space<vmem>>, vector<8x8xf32>
    tpu.vector_store %arg8[%c0_13, %c0_14], %26 {strides = array<i32>} : memref<8x32xf32, #tpu.memory_space<vmem>>, vector<8x8xf32>,
    %28 = vector.extract_strided_slice %8 {offsets = [0, 8], sizes = [8, 8], strides = [1, 1]} : vector<8x96xf32> to vector<8x8xf32>
    %29 = vector.extract_strided_slice %8 {offsets = [0, 40], sizes = [8, 8], strides = [1, 1]} : vector<8x96xf32> to vector<8x8xf32>
    %30 = vector.extract_strided_slice %8 {offsets = [0, 72], sizes = [8, 8], strides = [1, 1]} : vector<8x96xf32> to vector<8x8xf32>
    "tpu.trace_start"() <{level = 10 : i32, message = "qd,kd->qk"}> : () -> ()
    %cst_15 = arith.constant dense<0.000000e+00> : vector<8x8xf32>
    %31 = tpu.matmul %28, %29, %cst_15 {dimension_numbers = #tpu.dot_dimension_numbers<[1], [1], [0], [0], [0, 0, 1, 0], [], []>} : vector<8x8xf32>, vector<8x8xf32>, vector<8x8xf32> -> vector<8x8xf32>
    "tpu.trace_stop"() : () -> ()
    %32 = arith.addf %31, %10 : vector<8x8xf32>
    %cst_16 = arith.constant dense<0xFF800000> : vector<8xf32>
    %33 = vector.multi_reduction <maximumf>, %32, %cst_16 [1] : vector<8x8xf32> to vector<8xf32>
    %34 = vector.shape_cast %33 : vector<8xf32> to vector<8x1xf32>
    %35 = vector.broadcast %34 : vector<8x1xf32> to vector<8x8xf32>
    %36 = arith.subf %32, %35 : vector<8x8xf32>
    %37 = math.exp %36 : vector<8x8xf32>
    %cst_17 = arith.constant dense<0.000000e+00> : vector<8xf32>
    %38 = vector.multi_reduction <add>, %37, %cst_17 [1] : vector<8x8xf32> to vector<8xf32>
    %39 = vector.shape_cast %38 : vector<8xf32> to vector<8x1xf32>
    %40 = tpu.reciprocal %39 {approx = true} : vector<8x1xf32> -> vector<8x1xf32>
    %41 = vector.broadcast %40 : vector<8x1xf32> to vector<8x8xf32>
    %42 = arith.mulf %37, %41 : vector<8x8xf32>
    %cst_18 = arith.constant dense<0.000000e+00> : vector<8x8xf32>
    %43 = tpu.matmul %42, %30, %cst_18 {dimension_numbers = #tpu.dot_dimension_numbers<[1], [0], [0], [1], [0, 0, 1, 1], [], []>} : vector<8x8xf32>, vector<8x8xf32>, vector<8x8xf32> -> vector<8x8xf32>
    %c0_19 = arith.constant 0 : index
    %c8 = arith.constant 8 : index
    %44 = vector.load %arg8[%c0_19, %c8] : memref<8x32xf32, #tpu.memory_space<vmem>>, vector<8x8xf32>
    tpu.vector_store %arg8[%c0_19, %c8], %43 {strides = array<i32>} : memref<8x32xf32, #tpu.memory_space<vmem>>, vector<8x8xf32>,
    %45 = vector.extract_strided_slice %8 {offsets = [0, 16], sizes = [8, 8], strides = [1, 1]} : vector<8x96xf32> to vector<8x8xf32>
    %46 = vector.extract_strided_slice %8 {offsets = [0, 48], sizes = [8, 8], strides = [1, 1]} : vector<8x96xf32> to vector<8x8xf32>
    %47 = vector.extract_strided_slice %8 {offsets = [0, 80], sizes = [8, 8], strides = [1, 1]} : vector<8x96xf32> to vector<8x8xf32>
    "tpu.trace_start"() <{level = 10 : i32, message = "qd,kd->qk"}> : () -> ()
    %cst_20 = arith.constant dense<0.000000e+00> : vector<8x8xf32>
    %48 = tpu.matmul %45, %46, %cst_20 {dimension_numbers = #tpu.dot_dimension_numbers<[1], [1], [0], [0], [0, 0, 1, 0], [], []>} : vector<8x8xf32>, vector<8x8xf32>, vector<8x8xf32> -> vector<8x8xf32>
    "tpu.trace_stop"() : () -> ()
    %49 = arith.addf %48, %10 : vector<8x8xf32>
    %cst_21 = arith.constant dense<0xFF800000> : vector<8xf32>
    %50 = vector.multi_reduction <maximumf>, %49, %cst_21 [1] : vector<8x8xf32> to vector<8xf32>
    %51 = vector.shape_cast %50 : vector<8xf32> to vector<8x1xf32>
    %52 = vector.broadcast %51 : vector<8x1xf32> to vector<8x8xf32>
    %53 = arith.subf %49, %52 : vector<8x8xf32>
    %54 = math.exp %53 : vector<8x8xf32>
    %cst_22 = arith.constant dense<0.000000e+00> : vector<8xf32>
    %55 = vector.multi_reduction <add>, %54, %cst_22 [1] : vector<8x8xf32> to vector<8xf32>
    %56 = vector.shape_cast %55 : vector<8xf32> to vector<8x1xf32>
    %57 = tpu.reciprocal %56 {approx = true} : vector<8x1xf32> -> vector<8x1xf32>
    %58 = vector.broadcast %57 : vector<8x1xf32> to vector<8x8xf32>
    %59 = arith.mulf %54, %58 : vector<8x8xf32>
    %cst_23 = arith.constant dense<0.000000e+00> : vector<8x8xf32>
    %60 = tpu.matmul %59, %47, %cst_23 {dimension_numbers = #tpu.dot_dimension_numbers<[1], [0], [0], [1], [0, 0, 1, 1], [], []>} : vector<8x8xf32>, vector<8x8xf32>, vector<8x8xf32> -> vector<8x8xf32>
    %c0_24 = arith.constant 0 : index
    %c16 = arith.constant 16 : index
    %61 = vector.load %arg8[%c0_24, %c16] : memref<8x32xf32, #tpu.memory_space<vmem>>, vector<8x8xf32>
    tpu.vector_store %arg8[%c0_24, %c16], %60 {strides = array<i32>} : memref<8x32xf32, #tpu.memory_space<vmem>>, vector<8x8xf32>,
    %62 = vector.extract_strided_slice %8 {offsets = [0, 24], sizes = [8, 8], strides = [1, 1]} : vector<8x96xf32> to vector<8x8xf32>
    %63 = vector.extract_strided_slice %8 {offsets = [0, 56], sizes = [8, 8], strides = [1, 1]} : vector<8x96xf32> to vector<8x8xf32>
    %64 = vector.extract_strided_slice %8 {offsets = [0, 88], sizes = [8, 8], strides = [1, 1]} : vector<8x96xf32> to vector<8x8xf32>
    "tpu.trace_start"() <{level = 10 : i32, message = "qd,kd->qk"}> : () -> ()
    %cst_25 = arith.constant dense<0.000000e+00> : vector<8x8xf32>
    %65 = tpu.matmul %62, %63, %cst_25 {dimension_numbers = #tpu.dot_dimension_numbers<[1], [1], [0], [0], [0, 0, 1, 0], [], []>} : vector<8x8xf32>, vector<8x8xf32>, vector<8x8xf32> -> vector<8x8xf32>
    "tpu.trace_stop"() : () -> ()
    %66 = arith.addf %65, %10 : vector<8x8xf32>
    %cst_26 = arith.constant dense<0xFF800000> : vector<8xf32>
    %67 = vector.multi_reduction <maximumf>, %66, %cst_26 [1] : vector<8x8xf32> to vector<8xf32>
    %68 = vector.shape_cast %67 : vector<8xf32> to vector<8x1xf32>
    %69 = vector.broadcast %68 : vector<8x1xf32> to vector<8x8xf32>
    %70 = arith.subf %66, %69 : vector<8x8xf32>
    %71 = math.exp %70 : vector<8x8xf32>
    %cst_27 = arith.constant dense<0.000000e+00> : vector<8xf32>
    %72 = vector.multi_reduction <add>, %71, %cst_27 [1] : vector<8x8xf32> to vector<8xf32>
    %73 = vector.shape_cast %72 : vector<8xf32> to vector<8x1xf32>
    %74 = tpu.reciprocal %73 {approx = true} : vector<8x1xf32> -> vector<8x1xf32>
    %75 = vector.broadcast %74 : vector<8x1xf32> to vector<8x8xf32>
    %76 = arith.mulf %71, %75 : vector<8x8xf32>
    %cst_28 = arith.constant dense<0.000000e+00> : vector<8x8xf32>
    %77 = tpu.matmul %76, %64, %cst_28 {dimension_numbers = #tpu.dot_dimension_numbers<[1], [0], [0], [1], [0, 0, 1, 1], [], []>} : vector<8x8xf32>, vector<8x8xf32>, vector<8x8xf32> -> vector<8x8xf32>
    %c0_29 = arith.constant 0 : index
    %c24 = arith.constant 24 : index
    %78 = vector.load %arg8[%c0_29, %c24] : memref<8x32xf32, #tpu.memory_space<vmem>>, vector<8x8xf32>
    tpu.vector_store %arg8[%c0_29, %c24], %77 {strides = array<i32>} : memref<8x32xf32, #tpu.memory_space<vmem>>, vector<8x8xf32>,
    %c0_30 = arith.constant 0 : index
    %c0_31 = arith.constant 0 : index
    %79 = vector.load %arg8[%c0_30, %c0_31] : memref<8x32xf32, #tpu.memory_space<vmem>>, vector<8x32xf32>
    %c0_32 = arith.constant 0 : index
    %c0_33 = arith.constant 0 : index
    %80 = vector.load %arg5[%c0_32, %c0_33] : memref<32x32xf32, #tpu.memory_space<vmem>>, vector<32x32xf32>
    %cst_34 = arith.constant dense<0.000000e+00> : vector<8x32xf32>
    %81 = tpu.matmul %79, %80, %cst_34 {dimension_numbers = #tpu.dot_dimension_numbers<[1], [0], [0], [1], [0, 0, 1, 1], [], []>} : vector<8x32xf32>, vector<32x32xf32>, vector<8x32xf32> -> vector<8x32xf32>
    %c0_35 = arith.constant 0 : index
    %c0_36 = arith.constant 0 : index
    %82 = vector.load %arg6[%c0_35, %c0_36] : memref<1x32xf32, #tpu.memory_space<vmem>>, vector<1x32xf32>
    %83 = vector.shape_cast %82 : vector<1x32xf32> to vector<32xf32>
    %84 = vector.shape_cast %83 : vector<32xf32> to vector<1x32xf32>
    %85 = vector.broadcast %84 : vector<1x32xf32> to vector<8x32xf32>
    %86 = arith.addf %81, %85 : vector<8x32xf32>
    %c0_37 = arith.constant 0 : index
    %c0_38 = arith.constant 0 : index
    %c0_39 = arith.constant 0 : index
    %87 = vector.load %arg7[%c0_37, %c0_38, %c0_39] : memref<1x8x32xf32, #tpu.memory_space<vmem>>, vector<1x8x32xf32>
    %88 = vector.shape_cast %87 : vector<1x8x32xf32> to vector<8x32xf32>
    %89 = vector.shape_cast %86 : vector<8x32xf32> to vector<1x8x32xf32>
    tpu.vector_store %arg7[%c0_37, %c0_38, %c0_39], %89 {strides = array<i32>} : memref<1x8x32xf32, #tpu.memory_space<vmem>>, vector<1x8x32xf32>,
    return
  }
  func.func @transform_0(%arg0: i32) -> (i32, i32, i32) {
    %c0_i32 = arith.constant 0 : i32
    %c0_i32_0 = arith.constant 0 : i32
    %c0_i32_1 = arith.constant 0 : i32
    return %arg0, %c0_i32, %c0_i32_0 : i32, i32, i32
  }
  func.func @transform_1(%arg0: i32) -> (i32, i32, i32) {
    %c0_i32 = arith.constant 0 : i32
    %c0_i32_0 = arith.constant 0 : i32
    %c0_i32_1 = arith.constant 0 : i32
    return %arg0, %c0_i32, %c0_i32_0 : i32, i32, i32
  }
  func.func @transform_2(%arg0: i32) -> (i32, i32) {
    %c0_i32 = arith.constant 0 : i32
    %c0_i32_0 = arith.constant 0 : i32
    %c0_i32_1 = arith.constant 0 : i32
    return %c0_i32, %c0_i32_0 : i32, i32
  }
  func.func @transform_3(%arg0: i32) -> (i32, i32) {
    %c0_i32 = arith.constant 0 : i32
    %c0_i32_0 = arith.constant 0 : i32
    %c0_i32_1 = arith.constant 0 : i32
    return %c0_i32, %c0_i32_0 : i32, i32
  }
  func.func @transform_4(%arg0: i32) -> (i32, i32) {
    %c0_i32 = arith.constant 0 : i32
    %c0_i32_0 = arith.constant 0 : i32
    %c0_i32_1 = arith.constant 0 : i32
    return %c0_i32, %c0_i32_0 : i32, i32
  }
  func.func @transform_5(%arg0: i32) -> (i32, i32) {
    %c0_i32 = arith.constant 0 : i32
    %c0_i32_0 = arith.constant 0 : i32
    %c0_i32_1 = arith.constant 0 : i32
    return %c0_i32, %c0_i32_0 : i32, i32
  }
  func.func @transform_6(%arg0: i32) -> (i32, i32, i32) {
    %c0_i32 = arith.constant 0 : i32
    %c0_i32_0 = arith.constant 0 : i32
    %c0_i32_1 = arith.constant 0 : i32
    return %arg0, %c0_i32, %c0_i32_0 : i32, i32, i32
  }
}

module attributes {stable_mosaic.version = 11 : i64} {
  func.func @bertsum_attention_kernel(%arg0: i32, %arg1: memref<1x8x32xf32, #tpu.memory_space<vmem>>, %arg2: memref<1x8x8xf32, #tpu.memory_space<vmem>>, %arg3: memref<32x96xf32, #tpu.memory_space<vmem>>, %arg4: memref<1x96xf32, #tpu.memory_space<vmem>>, %arg5: memref<32x32xf32, #tpu.memory_space<vmem>>, %arg6: memref<1x32xf32, #tpu.memory_space<vmem>>, %arg7: memref<1x8x32xf32, #tpu.memory_space<vmem>>, %arg8: memref<8x32xf32, #tpu.memory_space<vmem>>) attributes {dimension_semantics = [#tpu.dimension_semantics<parallel>], iteration_bounds = array<i64: 2>, scalar_prefetch = 0 : i64, scratch_operands = 1 : i64, tpu.core_type = #tpu.core_type<tc>, window_params = [{transform_indices = @transform_0, window_bounds = array<i64: 1, 8, 32>}, {transform_indices = @transform_1, window_bounds = array<i64: 1, 8, 8>}, {pipeline_mode = #tpu.pipeline_mode<synchronous>, transform_indices = @transform_2, window_bounds = array<i64: 32, 96>}, {pipeline_mode = #tpu.pipeline_mode<synchronous>, transform_indices = @transform_3, window_bounds = array<i64: 1, 96>}, {pipeline_mode = #tpu.pipeline_mode<synchronous>, transform_indices = @transform_4, window_bounds = array<i64: 32, 32>}, {pipeline_mode = #tpu.pipeline_mode<synchronous>, transform_indices = @transform_5, window_bounds = array<i64: 1, 32>}, {transform_indices = @transform_6, window_bounds = array<i64: 1, 8, 32>}]} {
    %c0 = arith.constant 0 : index
    %c0_0 = arith.constant 0 : index
    %c0_1 = arith.constant 0 : index
    %0 = vector.load %arg1[%c0, %c0_0, %c0_1] : memref<1x8x32xf32, #tpu.memory_space<vmem>>, vector<1x8x32xf32>
    %1 = vector.shape_cast %0 : vector<1x8x32xf32> to vector<8x32xf32>
    %c0_2 = arith.constant 0 : index
    %c0_3 = arith.constant 0 : index
    %2 = vector.load %arg3[%c0_2, %c0_3] : memref<32x96xf32, #tpu.memory_space<vmem>>, vector<32x96xf32>
    %cst = arith.constant dense<0.000000e+00> : vector<8x96xf32>
    %3 = tpu.matmul %1, %2, %cst {dimension_numbers = #tpu.dot_dimension_numbers<[1], [0], [0], [1], [0, 0, 1, 1], [], []>} : vector<8x32xf32>, vector<32x96xf32>, vector<8x96xf32> -> vector<8x96xf32>
    %c0_4 = arith.constant 0 : index
    %c0_5 = arith.constant 0 : index
    %4 = vector.load %arg4[%c0_4, %c0_5] : memref<1x96xf32, #tpu.memory_space<vmem>>, vector<1x96xf32>
    %5 = vector.shape_cast %4 : vector<1x96xf32> to vector<96xf32>
    %6 = vector.shape_cast %5 : vector<96xf32> to vector<1x96xf32>
    %7 = vector.broadcast %6 : vector<1x96xf32> to vector<8x96xf32>
    %8 = arith.addf %3, %7 : vector<8x96xf32>
    %c0_6 = arith.constant 0 : index
    %c0_7 = arith.constant 0 : index
    %c0_8 = arith.constant 0 : index
    %9 = vector.load %arg2[%c0_6, %c0_7, %c0_8] : memref<1x8x8xf32, #tpu.memory_space<vmem>>, vector<1x8x8xf32>
    %10 = vector.shape_cast %9 : vector<1x8x8xf32> to vector<8x8xf32>
    %11 = vector.extract_strided_slice %8 {offsets = [0, 0], sizes = [8, 8], strides = [1, 1]} : vector<8x96xf32> to vector<8x8xf32>
    %12 = vector.extract_strided_slice %8 {offsets = [0, 32], sizes = [8, 8], strides = [1, 1]} : vector<8x96xf32> to vector<8x8xf32>
    %13 = vector.extract_strided_slice %8 {offsets = [0, 64], sizes = [8, 8], strides = [1, 1]} : vector<8x96xf32> to vector<8x8xf32>
    "tpu.trace_start"() <{level = 10 : i32, message = "qd,kd->qk"}> : () -> ()
    %cst_9 = arith.constant dense<0.000000e+00> : vector<8x8xf32>
    %14 = tpu.matmul %11, %12, %cst_9 {dimension_numbers = #tpu.dot_dimension_numbers<[1], [1], [0], [0], [0, 0, 1, 0], [], []>} : vector<8x8xf32>, vector<8x8xf32>, vector<8x8xf32> -> vector<8x8xf32>
    "tpu.trace_stop"() : () -> ()
    %15 = arith.addf %14, %10 : vector<8x8xf32>
    %cst_10 = arith.constant dense<0xFF800000> : vector<8xf32>
    %16 = vector.multi_reduction <maximumf>, %15, %cst_10 [1] : vector<8x8xf32> to vector<8xf32>
    %17 = vector.shape_cast %16 : vector<8xf32> to vector<8x1xf32>
    %18 = vector.broadcast %17 : vector<8x1xf32> to vector<8x8xf32>
    %19 = arith.subf %15, %18 : vector<8x8xf32>
    %20 = math.exp %19 : vector<8x8xf32>
    %cst_11 = arith.constant dense<0.000000e+00> : vector<8xf32>
    %21 = vector.multi_reduction <add>, %20, %cst_11 [1] : vector<8x8xf32> to vector<8xf32>
    %22 = vector.shape_cast %21 : vector<8xf32> to vector<8x1xf32>
    %23 = tpu.reciprocal %22 {approx = true} : vector<8x1xf32> -> vector<8x1xf32>
    %24 = vector.broadcast %23 : vector<8x1xf32> to vector<8x8xf32>
    %25 = arith.mulf %20, %24 : vector<8x8xf32>
    %cst_12 = arith.constant dense<0.000000e+00> : vector<8x8xf32>
    %26 = tpu.matmul %25, %13, %cst_12 {dimension_numbers = #tpu.dot_dimension_numbers<[1], [0], [0], [1], [0, 0, 1, 1], [], []>} : vector<8x8xf32>, vector<8x8xf32>, vector<8x8xf32> -> vector<8x8xf32>
    %c0_13 = arith.constant 0 : index
    %c0_14 = arith.constant 0 : index
    %27 = vector.load %arg8[%c0_13, %c0_14] : memref<8x32xf32, #tpu.memory_space<vmem>>, vector<8x8xf32>
    tpu.vector_store %arg8[%c0_13, %c0_14], %26 {strides = array<i32>} : memref<8x32xf32, #tpu.memory_space<vmem>>, vector<8x8xf32>,
    %28 = vector.extract_strided_slice %8 {offsets = [0, 8], sizes = [8, 8], strides = [1, 1]} : vector<8x96xf32> to vector<8x8xf32>
    %29 = vector.extract_strided_slice %8 {offsets = [0, 40], sizes = [8, 8], strides = [1, 1]} : vector<8x96xf32> to vector<8x8xf32>
    %30 = vector.extract_strided_slice %8 {offsets = [0, 72], sizes = [8, 8], strides = [1, 1]} : vector<8x96xf32> to vector<8x8xf32>
    "tpu.trace_start"() <{level = 10 : i32, message = "qd,kd->qk"}> : () -> ()
    %cst_15 = arith.constant dense<0.000000e+00> : vector<8x8xf32>
    %31 = tpu.matmul %28, %29, %cst_15 {dimension_numbers = #tpu.dot_dimension_numbers<[1], [1], [0], [0], [0, 0, 1, 0], [], []>} : vector<8x8xf32>, vector<8x8xf32>, vector<8x8xf32> -> vector<8x8xf32>
    "tpu.trace_stop"() : () -> ()
    %32 = arith.addf %31, %10 : vector<8x8xf32>
    %cst_16 = arith.constant dense<0xFF800000> : vector<8xf32>
    %33 = vector.multi_reduction <maximumf>, %32, %cst_16 [1] : vector<8x8xf32> to vector<8xf32>
    %34 = vector.shape_cast %33 : vector<8xf32> to vector<8x1xf32>
    %35 = vector.broadcast %34 : vector<8x1xf32> to vector<8x8xf32>
    %36 = arith.subf %32, %35 : vector<8x8xf32>
    %37 = math.exp %36 : vector<8x8xf32>
    %cst_17 = arith.constant dense<0.000000e+00> : vector<8xf32>
    %38 = vector.multi_reduction <add>, %37, %cst_17 [1] : vector<8x8xf32> to vector<8xf32>
    %39 = vector.shape_cast %38 : vector<8xf32> to vector<8x1xf32>
    %40 = tpu.reciprocal %39 {approx = true} : vector<8x1xf32> -> vector<8x1xf32>
    %41 = vector.broadcast %40 : vector<8x1xf32> to vector<8x8xf32>
    %42 = arith.mulf %37, %41 : vector<8x8xf32>
    %cst_18 = arith.constant dense<0.000000e+00> : vector<8x8xf32>
    %43 = tpu.matmul %42, %30, %cst_18 {dimension_numbers = #tpu.dot_dimension_numbers<[1], [0], [0], [1], [0, 0, 1, 1], [], []>} : vector<8x8xf32>, vector<8x8xf32>, vector<8x8xf32> -> vector<8x8xf32>
    %c0_19 = arith.constant 0 : index
    %c8 = arith.constant 8 : index
    %44 = vector.load %arg8[%c0_19, %c8] : memref<8x32xf32, #tpu.memory_space<vmem>>, vector<8x8xf32>
    tpu.vector_store %arg8[%c0_19, %c8], %43 {strides = array<i32>} : memref<8x32xf32, #tpu.memory_space<vmem>>, vector<8x8xf32>,
    %45 = vector.extract_strided_slice %8 {offsets = [0, 16], sizes = [8, 8], strides = [1, 1]} : vector<8x96xf32> to vector<8x8xf32>
    %46 = vector.extract_strided_slice %8 {offsets = [0, 48], sizes = [8, 8], strides = [1, 1]} : vector<8x96xf32> to vector<8x8xf32>
    %47 = vector.extract_strided_slice %8 {offsets = [0, 80], sizes = [8, 8], strides = [1, 1]} : vector<8x96xf32> to vector<8x8xf32>
    "tpu.trace_start"() <{level = 10 : i32, message = "qd,kd->qk"}> : () -> ()
    %cst_20 = arith.constant dense<0.000000e+00> : vector<8x8xf32>
    %48 = tpu.matmul %45, %46, %cst_20 {dimension_numbers = #tpu.dot_dimension_numbers<[1], [1], [0], [0], [0, 0, 1, 0], [], []>} : vector<8x8xf32>, vector<8x8xf32>, vector<8x8xf32> -> vector<8x8xf32>
    "tpu.trace_stop"() : () -> ()
    %49 = arith.addf %48, %10 : vector<8x8xf32>
    %cst_21 = arith.constant dense<0xFF800000> : vector<8xf32>
    %50 = vector.multi_reduction <maximumf>, %49, %cst_21 [1] : vector<8x8xf32> to vector<8xf32>
    %51 = vector.shape_cast %50 : vector<8xf32> to vector<8x1xf32>
    %52 = vector.broadcast %51 : vector<8x1xf32> to vector<8x8xf32>
    %53 = arith.subf %49, %52 : vector<8x8xf32>
    %54 = math.exp %53 : vector<8x8xf32>
    %cst_22 = arith.constant dense<0.000000e+00> : vector<8xf32>
    %55 = vector.multi_reduction <add>, %54, %cst_22 [1] : vector<8x8xf32> to vector<8xf32>
    %56 = vector.shape_cast %55 : vector<8xf32> to vector<8x1xf32>
    %57 = tpu.reciprocal %56 {approx = true} : vector<8x1xf32> -> vector<8x1xf32>
    %58 = vector.broadcast %57 : vector<8x1xf32> to vector<8x8xf32>
    %59 = arith.mulf %54, %58 : vector<8x8xf32>
    %cst_23 = arith.constant dense<0.000000e+00> : vector<8x8xf32>
    %60 = tpu.matmul %59, %47, %cst_23 {dimension_numbers = #tpu.dot_dimension_numbers<[1], [0], [0], [1], [0, 0, 1, 1], [], []>} : vector<8x8xf32>, vector<8x8xf32>, vector<8x8xf32> -> vector<8x8xf32>
    %c0_24 = arith.constant 0 : index
    %c16 = arith.constant 16 : index
    %61 = vector.load %arg8[%c0_24, %c16] : memref<8x32xf32, #tpu.memory_space<vmem>>, vector<8x8xf32>
    tpu.vector_store %arg8[%c0_24, %c16], %60 {strides = array<i32>} : memref<8x32xf32, #tpu.memory_space<vmem>>, vector<8x8xf32>,
    %62 = vector.extract_strided_slice %8 {offsets = [0, 24], sizes = [8, 8], strides = [1, 1]} : vector<8x96xf32> to vector<8x8xf32>
    %63 = vector.extract_strided_slice %8 {offsets = [0, 56], sizes = [8, 8], strides = [1, 1]} : vector<8x96xf32> to vector<8x8xf32>
    %64 = vector.extract_strided_slice %8 {offsets = [0, 88], sizes = [8, 8], strides = [1, 1]} : vector<8x96xf32> to vector<8x8xf32>
    "tpu.trace_start"() <{level = 10 : i32, message = "qd,kd->qk"}> : () -> ()
    %cst_25 = arith.constant dense<0.000000e+00> : vector<8x8xf32>
    %65 = tpu.matmul %62, %63, %cst_25 {dimension_numbers = #tpu.dot_dimension_numbers<[1], [1], [0], [0], [0, 0, 1, 0], [], []>} : vector<8x8xf32>, vector<8x8xf32>, vector<8x8xf32> -> vector<8x8xf32>
    "tpu.trace_stop"() : () -> ()
    %66 = arith.addf %65, %10 : vector<8x8xf32>
    %cst_26 = arith.constant dense<0xFF800000> : vector<8xf32>
    %67 = vector.multi_reduction <maximumf>, %66, %cst_26 [1] : vector<8x8xf32> to vector<8xf32>
    %68 = vector.shape_cast %67 : vector<8xf32> to vector<8x1xf32>
    %69 = vector.broadcast %68 : vector<8x1xf32> to vector<8x8xf32>
    %70 = arith.subf %66, %69 : vector<8x8xf32>
    %71 = math.exp %70 : vector<8x8xf32>
    %cst_27 = arith.constant dense<0.000000e+00> : vector<8xf32>
    %72 = vector.multi_reduction <add>, %71, %cst_27 [1] : vector<8x8xf32> to vector<8xf32>
    %73 = vector.shape_cast %72 : vector<8xf32> to vector<8x1xf32>
    %74 = tpu.reciprocal %73 {approx = true} : vector<8x1xf32> -> vector<8x1xf32>
    %75 = vector.broadcast %74 : vector<8x1xf32> to vector<8x8xf32>
    %76 = arith.mulf %71, %75 : vector<8x8xf32>
    %cst_28 = arith.constant dense<0.000000e+00> : vector<8x8xf32>
    %77 = tpu.matmul %76, %64, %cst_28 {dimension_numbers = #tpu.dot_dimension_numbers<[1], [0], [0], [1], [0, 0, 1, 1], [], []>} : vector<8x8xf32>, vector<8x8xf32>, vector<8x8xf32> -> vector<8x8xf32>
    %c0_29 = arith.constant 0 : index
    %c24 = arith.constant 24 : index
    %78 = vector.load %arg8[%c0_29, %c24] : memref<8x32xf32, #tpu.memory_space<vmem>>, vector<8x8xf32>
    tpu.vector_store %arg8[%c0_29, %c24], %77 {strides = array<i32>} : memref<8x32xf32, #tpu.memory_space<vmem>>, vector<8x8xf32>,
    %c0_30 = arith.constant 0 : index
    %c0_31 = arith.constant 0 : index
    %79 = vector.load %arg8[%c0_30, %c0_31] : memref<8x32xf32, #tpu.memory_space<vmem>>, vector<8x32xf32>
    %c0_32 = arith.constant 0 : index
    %c0_33 = arith.constant 0 : index
    %80 = vector.load %arg5[%c0_32, %c0_33] : memref<32x32xf32, #tpu.memory_space<vmem>>, vector<32x32xf32>
    %cst_34 = arith.constant dense<0.000000e+00> : vector<8x32xf32>
    %81 = tpu.matmul %79, %80, %cst_34 {dimension_numbers = #tpu.dot_dimension_numbers<[1], [0], [0], [1], [0, 0, 1, 1], [], []>} : vector<8x32xf32>, vector<32x32xf32>, vector<8x32xf32> -> vector<8x32xf32>
    %c0_35 = arith.constant 0 : index
    %c0_36 = arith.constant 0 : index
    %82 = vector.load %arg6[%c0_35, %c0_36] : memref<1x32xf32, #tpu.memory_space<vmem>>, vector<1x32xf32>
    %83 = vector.shape_cast %82 : vector<1x32xf32> to vector<32xf32>
    %84 = vector.shape_cast %83 : vector<32xf32> to vector<1x32xf32>
    %85 = vector.broadcast %84 : vector<1x32xf32> to vector<8x32xf32>
    %86 = arith.addf %81, %85 : vector<8x32xf32>
    %c0_37 = arith.constant 0 : index
    %c0_38 = arith.constant 0 : index
    %c0_39 = arith.constant 0 : index
    %87 = vector.load %arg7[%c0_37, %c0_38, %c0_39] : memref<1x8x32xf32, #tpu.memory_space<vmem>>, vector<1x8x32xf32>
    %88 = vector.shape_cast %87 : vector<1x8x32xf32> to vector<8x32xf32>
    %89 = vector.shape_cast %86 : vector<8x32xf32> to vector<1x8x32xf32>
    tpu.vector_store %arg7[%c0_37, %c0_38, %c0_39], %89 {strides = array<i32>} : memref<1x8x32xf32, #tpu.memory_space<vmem>>, vector<1x8x32xf32>,
    return
  }
  func.func @transform_0(%arg0: i32) -> (i32, i32, i32) {
    %c0_i32 = arith.constant 0 : i32
    %c0_i32_0 = arith.constant 0 : i32
    %c0_i32_1 = arith.constant 0 : i32
    return %arg0, %c0_i32, %c0_i32_0 : i32, i32, i32
  }
  func.func @transform_1(%arg0: i32) -> (i32, i32, i32) {
    %c0_i32 = arith.constant 0 : i32
    %c0_i32_0 = arith.constant 0 : i32
    %c0_i32_1 = arith.constant 0 : i32
    return %arg0, %c0_i32, %c0_i32_0 : i32, i32, i32
  }
  func.func @transform_2(%arg0: i32) -> (i32, i32) {
    %c0_i32 = arith.constant 0 : i32
    %c0_i32_0 = arith.constant 0 : i32
    %c0_i32_1 = arith.constant 0 : i32
    return %c0_i32, %c0_i32_0 : i32, i32
  }
  func.func @transform_3(%arg0: i32) -> (i32, i32) {
    %c0_i32 = arith.constant 0 : i32
    %c0_i32_0 = arith.constant 0 : i32
    %c0_i32_1 = arith.constant 0 : i32
    return %c0_i32, %c0_i32_0 : i32, i32
  }
  func.func @transform_4(%arg0: i32) -> (i32, i32) {
    %c0_i32 = arith.constant 0 : i32
    %c0_i32_0 = arith.constant 0 : i32
    %c0_i32_1 = arith.constant 0 : i32
    return %c0_i32, %c0_i32_0 : i32, i32
  }
  func.func @transform_5(%arg0: i32) -> (i32, i32) {
    %c0_i32 = arith.constant 0 : i32
    %c0_i32_0 = arith.constant 0 : i32
    %c0_i32_1 = arith.constant 0 : i32
    return %c0_i32, %c0_i32_0 : i32, i32
  }
  func.func @transform_6(%arg0: i32) -> (i32, i32, i32) {
    %c0_i32 = arith.constant 0 : i32
    %c0_i32_0 = arith.constant 0 : i32
    %c0_i32_1 = arith.constant 0 : i32
    return %arg0, %c0_i32, %c0_i32_0 : i32, i32, i32
  }
}

</mosaic_0001>

<llo_original>
// kernel: tpu_custom_call.1
$region0: #{tpu_custom_call.1}
  #allocation0 [shape = 'u32[]', space=smem, size = 0x4, offset = 0x4, fixed_abs, tag = 'smem constant byte address 0x4 - core index']
  #allocation1 [shape = 'u32[144,128]{1,0:T(1,128)}', space=vmem, size = 0x12000, scoped, tag = 'internal scratch']
  #allocation2 [shape = 'f32[8,32]{1,0:T(8,128)}', space=vmem, size = 0x1000, scoped, tag = 'scratch operand']
  %s0 = inlined_call_operand.hbm [shape: f32[2,8,32], index: 0, kind: input, shape index: {}]
  %s1 = inlined_call_operand.hbm [shape: f32[2,8,8], index: 1, kind: input, shape index: {}]
  %s2 = inlined_call_operand.hbm [shape: f32[32,96], index: 2, kind: input, shape index: {}]
  %s3 = inlined_call_operand.vmem [shape: f32[1,96], index: 3, kind: input, shape index: {}]
  %s4 = inlined_call_operand.hbm [shape: f32[32,32], index: 4, kind: input, shape index: {}]
  %s5 = inlined_call_operand.vmem [shape: f32[1,32], index: 5, kind: input, shape index: {}]
  %s6 = inlined_call_operand.hbm [shape: f32[2,8,32], index: 6, kind: output, shape index: {}]
  %s7 = sld [smem:[#allocation0]]
  $region73: #{tpu_custom_call.1} parent=0
    _
  %s9 = ssub.s32 1, %s7
  %s10 = scalar_select 0, %s9, %s7
  $region1: #{tpu_custom_call.1} parent=0
    #allocation3 [shape = 'u8[8192]{0}', space=vmem, size = 0x2000, scoped, tag = 'input window, operand 0']
    #allocation4 [shape = 's32[2]{0}', space=sflag, size = 0x8, scoped, tag = 'scoped memory for tpu_custom_call.1']
    #allocation5 [shape = 's32[2]{0}', space=sflag, size = 0x8, scoped, tag = 'scoped memory for tpu_custom_call.1']
    #allocation6 [shape = 'u8[8192]{0}', space=vmem, size = 0x2000, scoped, tag = 'input window, operand 1']
    #allocation7 [shape = 's32[2]{0}', space=sflag, size = 0x8, scoped, tag = 'scoped memory for tpu_custom_call.1']
    #allocation8 [shape = 'u8[16384]{0}', space=vmem, size = 0x4000, scoped, tag = 'input window, operand 2, single buffered']
    #allocation9 [shape = 'u8[16384]{0}', space=vmem, size = 0x4000, scoped, tag = 'input window, operand 4, single buffered']
    #allocation10 [shape = 's32[1]{0}', space=sflag, size = 0x4, scoped, tag = 'scoped memory for tpu_custom_call.1']
    #allocation11 [shape = 'u8[8192]{0}', space=vmem, size = 0x2000, scoped, tag = 'output window, operand 0']
    %11 = vsyncpa [#allocation4], 0
    %s12 = scalar_lea.sflag [#allocation4], 1
    %13 = vsyncpa %s12, 0
    %14 = vsyncpa [#allocation7], 0
    %s15 = scalar_lea.sflag [#allocation7], 1
    %16 = vsyncpa %s15, 0
    %17 = vsyncpa [#allocation10], 0
    %18 = vsyncpa [#allocation5], 0
    %s19 = scalar_lea.sflag [#allocation5], 1
    %20 = vsyncpa %s19, 0
    loop: start=0, step=1, limit=4
    $region2: #{tpu_custom_call.1} parent=1 // loop_pre_header
      _
    $region3: #{tpu_custom_call.1} parent=1 // loop_header
      %s22 = sphi 0, %s26
      %p23 = scmp.ge.s32.totalorder %s22, 4
      %s32 = sphi 0, %s34
      %s35 = sphi 0, %s32
      %s36 = sphi 0, %s35
      %s52 = sphi 0, %s36
      %s58 = sphi 0, %s60
      %s61 = sphi 0, %s58
      %s62 = sphi 0, %s61
      %s78 = sphi 0, %s62
      %s82 = sphi 0, %s82
      %s84 = sphi 0, %s82
      %s85 = sphi 0, %s84
      %s99 = sphi 0, %s85
      %s103 = sphi 0, %s103
      %s105 = sphi 0, %s103
      %s106 = sphi 0, %s105
      %s120 = sphi 0, %s106
      %s124 = sphi 0, %s124
      %s126 = sphi 0, %s124
      %s127 = sphi 0, %s126
      %s141 = sphi 0, %s127
      %s145 = sphi 0, %s145
      %s147 = sphi 0, %s145
      %s148 = sphi 0, %s147
      %s162 = sphi 0, %s148
      %s168 = sphi 0, %s170
      %s171 = sphi 0, %s168
      %s172 = sphi 0, %s171
      %s188 = sphi 0, %s172
    $region4: #{tpu_custom_call.1} parent=1 // loop_header_branch
      %25 = sbr.rel (%p23) target = $region8
    $region5: #{tpu_custom_call.1} parent=1 // loop_body
      %s27 = ssub.s32 %s22, 1
      %s28 = ssub.s32 %s22, 2
      %s29 = sadd.s32 %s22, 1
      %s30 = ssub.s32 %s22, %s29
      %p31 = scmp.eq.s32.totalorder %s30, 0
      %s33 = sadd.s32 %s32, 1
      %s34 = scalar_select %p31, %s32, %s33
      %p37 = pneg %p31
      %p38 = scmp.eq.s32.totalorder %s22, 1
      %p39 = por %p37, %p38
      %p40 = scmp.ne.s32.totalorder %s32, %s35
      %p41 = scmp.eq.s32.totalorder %s22, 0
      %p42 = por %p40, %p41
      %p43 = scmp.ne.s32.totalorder %s32, %s35
      %p44 = scmp.eq.s32.totalorder %s27, 1
      %p45 = por %p43, %p44
      %p46 = scmp.ne.s32.totalorder %s35, %s36
      %p47 = scmp.eq.s32.totalorder %s27, 0
      %p48 = por %p46, %p47
      %p49 = scmp.ne.s32.totalorder %s35, %s36
      %p50 = scmp.eq.s32.totalorder %s28, 1
      %p51 = por %p49, %p50
      %p53 = scmp.ne.s32.totalorder %s36, %s52
      %p54 = scmp.eq.s32.totalorder %s28, 0
      %p55 = por %p53, %p54
      %s56 = ssub.s32 %s22, %s29
      %p57 = scmp.eq.s32.totalorder %s56, 0
      %s59 = sadd.s32 %s58, 1
      %s60 = scalar_select %p57, %s58, %s59
      %p63 = pneg %p57
      %p64 = scmp.eq.s32.totalorder %s22, 1
      %p65 = por %p63, %p64
      %p66 = scmp.ne.s32.totalorder %s58, %s61
      %p67 = scmp.eq.s32.totalorder %s22, 0
      %p68 = por %p66, %p67
      %p69 = scmp.ne.s32.totalorder %s58, %s61
      %p70 = scmp.eq.s32.totalorder %s27, 1
      %p71 = por %p69, %p70
      %p72 = scmp.ne.s32.totalorder %s61, %s62
      %p73 = scmp.eq.s32.totalorder %s27, 0
      %p74 = por %p72, %p73
      %p75 = scmp.ne.s32.totalorder %s61, %s62
      %p76 = scmp.eq.s32.totalorder %s28, 1
      %p77 = por %p75, %p76
      %p79 = scmp.ne.s32.totalorder %s62, %s78
      %p80 = scmp.eq.s32.totalorder %s28, 0
      %p81 = por %p79, %p80
      %s83 = sadd.s32 %s82, 1
      %p86 = scmp.eq.s32.totalorder %s22, 1
      %p87 = scmp.ne.s32.totalorder %s82, %s84
      %p88 = scmp.eq.s32.totalorder %s22, 0
      %p89 = por %p87, %p88
      %p90 = scmp.ne.s32.totalorder %s82, %s84
      %p91 = scmp.eq.s32.totalorder %s27, 1
      %p92 = por %p90, %p91
      %p93 = scmp.ne.s32.totalorder %s84, %s85
      %p94 = scmp.eq.s32.totalorder %s27, 0
      %p95 = por %p93, %p94
      %p96 = scmp.ne.s32.totalorder %s84, %s85
      %p97 = scmp.eq.s32.totalorder %s28, 1
      %p98 = por %p96, %p97
      %p100 = scmp.ne.s32.totalorder %s85, %s99
      %p101 = scmp.eq.s32.totalorder %s28, 0
      %p102 = por %p100, %p101
      %s104 = sadd.s32 %s103, 1
      %p107 = scmp.eq.s32.totalorder %s22, 1
      %p108 = scmp.ne.s32.totalorder %s103, %s105
      %p109 = scmp.eq.s32.totalorder %s22, 0
      %p110 = por %p108, %p109
      %p111 = scmp.ne.s32.totalorder %s103, %s105
      %p112 = scmp.eq.s32.totalorder %s27, 1
      %p113 = por %p111, %p112
      %p114 = scmp.ne.s32.totalorder %s105, %s106
      %p115 = scmp.eq.s32.totalorder %s27, 0
      %p116 = por %p114, %p115
      %p117 = scmp.ne.s32.totalorder %s105, %s106
      %p118 = scmp.eq.s32.totalorder %s28, 1
      %p119 = por %p117, %p118
      %p121 = scmp.ne.s32.totalorder %s106, %s120
      %p122 = scmp.eq.s32.totalorder %s28, 0
      %p123 = por %p121, %p122
      %s125 = sadd.s32 %s124, 1
      %p128 = scmp.eq.s32.totalorder %s22, 1
      %p129 = scmp.ne.s32.totalorder %s124, %s126
      %p130 = scmp.eq.s32.totalorder %s22, 0
      %p131 = por %p129, %p130
      %p132 = scmp.ne.s32.totalorder %s124, %s126
      %p133 = scmp.eq.s32.totalorder %s27, 1
      %p134 = por %p132, %p133
      %p135 = scmp.ne.s32.totalorder %s126, %s127
      %p136 = scmp.eq.s32.totalorder %s27, 0
      %p137 = por %p135, %p136
      %p138 = scmp.ne.s32.totalorder %s126, %s127
      %p139 = scmp.eq.s32.totalorder %s28, 1
      %p140 = por %p138, %p139
      %p142 = scmp.ne.s32.totalorder %s127, %s141
      %p143 = scmp.eq.s32.totalorder %s28, 0
      %p144 = por %p142, %p143
      %s146 = sadd.s32 %s145, 1
      %p149 = scmp.eq.s32.totalorder %s22, 1
      %p150 = scmp.ne.s32.totalorder %s145, %s147
      %p151 = scmp.eq.s32.totalorder %s22, 0
      %p152 = por %p150, %p151
      %p153 = scmp.ne.s32.totalorder %s145, %s147
      %p154 = scmp.eq.s32.totalorder %s27, 1
      %p155 = por %p153, %p154
      %p156 = scmp.ne.s32.totalorder %s147, %s148
      %p157 = scmp.eq.s32.totalorder %s27, 0
      %p158 = por %p156, %p157
      %p159 = scmp.ne.s32.totalorder %s147, %s148
      %p160 = scmp.eq.s32.totalorder %s28, 1
      %p161 = por %p159, %p160
      %p163 = scmp.ne.s32.totalorder %s148, %s162
      %p164 = scmp.eq.s32.totalorder %s28, 0
      %p165 = por %p163, %p164
      %s166 = ssub.s32 %s22, %s29
      %p167 = scmp.eq.s32.totalorder %s166, 0
      %s169 = sadd.s32 %s168, 1
      %s170 = scalar_select %p167, %s168, %s169
      %p173 = pneg %p167
      %p174 = scmp.eq.s32.totalorder %s22, 1
      %p175 = por %p173, %p174
      %p176 = scmp.ne.s32.totalorder %s168, %s171
      %p177 = scmp.eq.s32.totalorder %s22, 0
      %p178 = por %p176, %p177
      %p179 = scmp.ne.s32.totalorder %s168, %s171
      %p180 = scmp.eq.s32.totalorder %s27, 1
      %p181 = por %p179, %p180
      %p182 = scmp.ne.s32.totalorder %s171, %s172
      %p183 = scmp.eq.s32.totalorder %s27, 0
      %p184 = por %p182, %p183
      %p185 = scmp.ne.s32.totalorder %s171, %s172
      %p186 = scmp.eq.s32.totalorder %s28, 1
      %p187 = por %p185, %p186
      %p189 = scmp.ne.s32.totalorder %s172, %s188
      %p190 = scmp.eq.s32.totalorder %s28, 0
      %p191 = por %p189, %p190
      %p192 = scmp.le.s32.totalorder 1, %s22
      %p193 = scmp.lt.s32.totalorder %s22, 3
      %p194 = pnand %p192, %p193
      %p195 = pneg %p194
      // Predicated region
      $region9: #{tpu_custom_call.1} parent=5 // pred_check
        _
      $region10: #{tpu_custom_call.1} parent=5 // pred_check_branch
        %197 = sbr.rel (%p194) target = $region12
      $region11: #{tpu_custom_call.1} parent=5 // pred_region
        %s198 = ssub.s32 %s22, 1
        // Predicated region
        $region13: #{tpu_custom_call.1} parent=11 // pred_check
          %p199 = pneg %p95
        $region14: #{tpu_custom_call.1} parent=11 // pred_check_branch
          %201 = sbr.rel (%p199) target = $region16
        $region15: #{tpu_custom_call.1} parent=11 // pred_region
          %s203 = ssub.s32 512, 512
          %204 = vsyncadd [#allocation7], %s203
          %s205 = sshll.u32 [#allocation8], 4
          %s206 = int_to_ptr.vmem [resolvable:$true] %s205
          %211 = dma.hbm_to_vmem [thread:$0]  %s2, 512, %s206, [#allocation7], 128, 128, 8
        $region16: #{tpu_custom_call.1} parent=11 // pred_fallthru
          _
        // Predicated region
        $region17: #{tpu_custom_call.1} parent=11 // pred_check
          %p212 = pneg %p116
        $region18: #{tpu_custom_call.1} parent=11 // pred_check_branch
          %214 = sbr.rel (%p212) target = $region20
        $region19: #{tpu_custom_call.1} parent=11 // pred_region
          _
        $region20: #{tpu_custom_call.1} parent=11 // pred_fallthru
          _
        // Predicated region
        $region21: #{tpu_custom_call.1} parent=11 // pred_check
          %p215 = pneg %p137
        $region22: #{tpu_custom_call.1} parent=11 // pred_check_branch
          %217 = sbr.rel (%p215) target = $region24
        $region23: #{tpu_custom_call.1} parent=11 // pred_region
          %s219 = ssub.s32 512, 512
          %220 = vsyncadd [#allocation10], %s219
          %s221 = sshll.u32 [#allocation9], 4
          %s222 = int_to_ptr.vmem [resolvable:$true] %s221
          %227 = dma.hbm_to_vmem [thread:$0]  %s4, 512, %s222, [#allocation10], 128, 128, 8
        $region24: #{tpu_custom_call.1} parent=11 // pred_fallthru
          _
        // Predicated region
        $region25: #{tpu_custom_call.1} parent=11 // pred_check
          %p228 = pneg %p158
        $region26: #{tpu_custom_call.1} parent=11 // pred_check_branch
          %230 = sbr.rel (%p228) target = $region28
        $region27: #{tpu_custom_call.1} parent=11 // pred_region
          _
        $region28: #{tpu_custom_call.1} parent=11 // pred_fallthru
          _
      $region12: #{tpu_custom_call.1} parent=5 // pred_fallthru
        _
      %p231 = scmp.lt.s32.totalorder %s22, 2
      // Predicated region
      $region29: #{tpu_custom_call.1} parent=5 // pred_check
        %p232 = pneg %p231
      $region30: #{tpu_custom_call.1} parent=5 // pred_check_branch
        %234 = sbr.rel (%p232) target = $region32
      $region31: #{tpu_custom_call.1} parent=5 // pred_region
        // Predicated region
        $region33: #{tpu_custom_call.1} parent=31 // pred_check
          %p235 = pneg %p42
        $region34: #{tpu_custom_call.1} parent=31 // pred_check_branch
          %237 = sbr.rel (%p235) target = $region36
        $region35: #{tpu_custom_call.1} parent=31 // pred_region
          %s238 = sand.u32 %s32, 1
          %s239 = scalar_lea.sflag [#allocation4], %s238
          %s240 = sand.u32 %s32, 1
          %s241 = smul.addr %s240, 8
          %s242 = scalar_lea.vmem [#allocation3], %s241
          %s244 = ssub.s32 128, 128
          %245 = vsyncadd %s239, %s244
          %s246 = smul.addr %s22, 128
          %s247 = scalar_lea.hbm %s0, %s246
          %s249 = sshll.u32 %s242, 4
          %s250 = int_to_ptr.vmem [resolvable:$true] %s249
          %252 = dma.hbm_to_vmem [thread:$0]  %s247, 128, %s250, %s239
        $region36: #{tpu_custom_call.1} parent=31 // pred_fallthru
          _
        // Predicated region
        $region37: #{tpu_custom_call.1} parent=31 // pred_check
          %p253 = pneg %p68
        $region38: #{tpu_custom_call.1} parent=31 // pred_check_branch
          %255 = sbr.rel (%p253) target = $region40
        $region39: #{tpu_custom_call.1} parent=31 // pred_region
          %s256 = sand.u32 %s22, 1
          %s257 = scalar_lea.sflag [#allocation7], %s256
          %s258 = sand.u32 %s58, 1
          %s259 = smul.addr %s258, 8
          %s260 = scalar_lea.vmem [#allocation6], %s259
          %s262 = ssub.s32 128, 128
          %263 = vsyncadd %s257, %s262
          %s264 = smul.addr %s22, 128
          %s265 = scalar_lea.hbm %s1, %s264
          %s267 = sshll.u32 %s260, 4
          %s268 = int_to_ptr.vmem [resolvable:$true] %s267
          %270 = dma.hbm_to_vmem [thread:$0]  %s265, 128, %s268, %s257
        $region40: #{tpu_custom_call.1} parent=31 // pred_fallthru
          _
      $region32: #{tpu_custom_call.1} parent=5 // pred_fallthru
        _
      %p271 = scmp.le.s32.totalorder 1, %s22
      %p272 = scmp.lt.s32.totalorder %s22, 3
      %p273 = pnand %p271, %p272
      %p274 = pneg %p273
      // Predicated region
      $region41: #{tpu_custom_call.1} parent=5 // pred_check
        _
      $region42: #{tpu_custom_call.1} parent=5 // pred_check_branch
        %276 = sbr.rel (%p273) target = $region44
      $region43: #{tpu_custom_call.1} parent=5 // pred_region
        %s277 = ssub.s32 %s22, 1
        %s278 = sand.u32 %s35, 1
        %s279 = scalar_lea.sflag [#allocation4], %s278
        %s280 = sand.u32 %s35, 1
        %s281 = smul.addr %s280, 8
        %s282 = scalar_lea.vmem [#allocation3], %s281
        // Predicated region
        $region45: #{tpu_custom_call.1} parent=43 // pred_check
          %p283 = pneg %p48
        $region46: #{tpu_custom_call.1} parent=43 // pred_check_branch
          %285 = sbr.rel (%p283) target = $region48
        $region47: #{tpu_custom_call.1} parent=43 // pred_region
          %286 = dma.done %s279, 128
        $region48: #{tpu_custom_call.1} parent=43 // pred_fallthru
          _
        %s287 = sand.u32 %s27, 1
        %s288 = scalar_lea.sflag [#allocation7], %s287
        %s289 = sand.u32 %s61, 1
        %s290 = smul.addr %s289, 8
        %s291 = scalar_lea.vmem [#allocation6], %s290
        // Predicated region
        $region49: #{tpu_custom_call.1} parent=43 // pred_check
          %p292 = pneg %p74
        $region50: #{tpu_custom_call.1} parent=43 // pred_check_branch
          %294 = sbr.rel (%p292) target = $region52
        $region51: #{tpu_custom_call.1} parent=43 // pred_region
          %295 = dma.done %s288, 128
        $region52: #{tpu_custom_call.1} parent=43 // pred_fallthru
          _
        // Predicated region
        $region53: #{tpu_custom_call.1} parent=43 // pred_check
          %p296 = pneg %p95
        $region54: #{tpu_custom_call.1} parent=43 // pred_check_branch
          %298 = sbr.rel (%p296) target = $region56
        $region55: #{tpu_custom_call.1} parent=43 // pred_region
          %299 = dma.done [#allocation7], 512
        $region56: #{tpu_custom_call.1} parent=43 // pred_fallthru
          _
        // Predicated region
        $region57: #{tpu_custom_call.1} parent=43 // pred_check
          %p300 = pneg %p137
        $region58: #{tpu_custom_call.1} parent=43 // pred_check_branch
          %302 = sbr.rel (%p300) target = $region60
        $region59: #{tpu_custom_call.1} parent=43 // pred_region
          %303 = dma.done [#allocation10], 512
        $region60: #{tpu_custom_call.1} parent=43 // pred_fallthru
          _
        %s304 = sand.u32 %s35, 1
        %s305 = scalar_lea.sflag [#allocation4], %s304
        %s306 = sand.u32 %s35, 1
        %s307 = smul.addr %s306, 8
        %s308 = scalar_lea.vmem [#allocation3], %s307
        %p309 = pneg %p48
        %p310 = pneg %p45
        %s311 = sand.u32 %s27, 1
        %s312 = scalar_lea.sflag [#allocation7], %s311
        %s313 = sand.u32 %s61, 1
        %s314 = smul.addr %s313, 8
        %s315 = scalar_lea.vmem [#allocation6], %s314
        %p316 = pneg %p74
        %p317 = pneg %p71
        %p318 = pneg %p95
        %p319 = pneg %p92
        %p320 = pneg %p116
        %p321 = pneg %p113
        %p322 = pneg %p137
        %p323 = pneg %p134
        %p324 = pneg %p158
        %p325 = pneg %p155
        %p326 = pneg %p184
        %p327 = pneg %p181
        %s328 = sand.u32 %s171, 1
        %s329 = scalar_lea.sflag [#allocation5], %s328
        %s330 = sand.u32 %s171, 1
        %s331 = smul.addr %s330, 8
        %s332 = scalar_lea.vmem [#allocation11], %s331
        %v333 = vld [vmem:[%s282] sm:$0xff]
        %v334 = vld [vmem:[#allocation8] sm:$0xff]
        %v335 = vld [vmem:[#allocation8 + $0x8] sm:$0xff]
        %v336 = vld [vmem:[#allocation8 + $0x10] sm:$0xff]
        %v337 = vld [vmem:[#allocation8 + $0x18] sm:$0xff]
        %v338 = vld [vmem:[%s3] sm:$0x1]
        %v340 = vlaneseq
        %v341 = vshrl.u32 %v340, 7
        %v342 = vsub.s32 0, %v341
        %v343 = vrot.slane %v338, %v342
        %vm345 = vcmask 261120
        %v347 = vsel %vm345, %v333, 0
        %349 = vmatprep.subr.mxu0 0.0
        %350 = vmatpush1.msra.mxu0 0.0
        %351 = vmatprep.subr.mxu0 0.0
        %352 = vmatpush1.msra.mxu0 0.0
        %353 = vmatprep.subr.mxu0 0.0
        %354 = vmatpush1.msra.mxu0 0.0
        %355 = vmatprep.subr.mxu0 0.0
        %356 = vmatpush1.msra.mxu0 0.0
        %357 = vmatprep.subr.mxu0 0.0
        %358 = vmatpush1.msra.mxu0 0.0
        %359 = vmatprep.subr.mxu0 0.0
        %360 = vmatpush1.msra.mxu0 0.0
        %361 = vmatprep.subr.mxu0 0.0
        %362 = vmatpush1.msra.mxu0 0.0
        %363 = vmatprep.subr.mxu0 0.0
        %364 = vmatpush1.msra.mxu0 0.0
        %365 = vmatprep.subr.mxu0 0.0
        %366 = vmatpush1.msra.mxu0 0.0
        %367 = vmatprep.subr.mxu0 0.0
        %368 = vmatpush1.msra.mxu0 0.0
        %369 = vmatprep.subr.mxu0 0.0
        %370 = vmatpush1.msra.mxu0 0.0
        %371 = vmatprep.subr.mxu0 0.0
        %372 = vmatpush1.msra.mxu0 0.0
        %373 = vmatprep.subr.mxu0 0.0
        %374 = vmatpush1.msra.mxu0 %v337
        %375 = vmatprep.subr.mxu0 0.0
        %376 = vmatpush1.msra.mxu0 %v336
        %377 = vmatprep.subr.mxu0 0.0
        %378 = vmatpush1.msra.mxu0 %v335
        %379 = vmatprep.subr.mxu0 0.0
        %380 = vmatpush1.msra.mxu0 %v334
        %381 = vmatprep.subr.mxu0 0.0
        %382 = vmatpush2.msra.mxu0 0.0
        %383 = vmatprep.subr.mxu0 0.0
        %384 = vmatpush2.msra.mxu0 0.0
        %385 = vmatprep.subr.mxu0 0.0
        %386 = vmatpush2.msra.mxu0 0.0
        %387 = vmatprep.subr.mxu0 0.0
        %388 = vmatpush2.msra.mxu0 0.0
        %389 = vmatprep.subr.mxu0 0.0
        %390 = vmatpush2.msra.mxu0 0.0
        %391 = vmatprep.subr.mxu0 0.0
        %392 = vmatpush2.msra.mxu0 0.0
        %393 = vmatprep.subr.mxu0 0.0
        %394 = vmatpush2.msra.mxu0 0.0
        %395 = vmatprep.subr.mxu0 0.0
        %396 = vmatpush2.msra.mxu0 0.0
        %397 = vmatprep.subr.mxu0 0.0
        %398 = vmatpush2.msra.mxu0 0.0
        %399 = vmatprep.subr.mxu0 0.0
        %400 = vmatpush2.msra.mxu0 0.0
        %401 = vmatprep.subr.mxu0 0.0
        %402 = vmatpush2.msra.mxu0 0.0
        %403 = vmatprep.subr.mxu0 0.0
        %404 = vmatpush2.msra.mxu0 0.0
        %405 = vmatprep.subr.mxu0 0.0
        %406 = vmatpush2.msra.mxu0 0.0
        %407 = vmatprep.subr.mxu0 0.0
        %408 = vmatpush2.msra.mxu0 0.0
        %409 = vmatprep.subr.mxu0 0.0
        %410 = vmatpush2.msra.mxu0 0.0
        %411 = vmatprep.subr.mxu0 0.0
        %412 = vmatpush2.msra.mxu0 0.0
        %413 = vmatprep.mubr.f32.mxu0 0.0
        %414 = vmatmul.mubr.f32.gmra.mxu0 %v347
        %v415 = vpop.f32.mrf.mxu0
        %v416 = vadd.f32 %v343, %v415
        %v417 = vpop.f32.mrf.mxu0
        %418 = vdwg.mxu0
        %v419 = vld [vmem:[%s291] sm:$0xff]
        %421 = vrot.lane.b32.xlu0 %v416, 96
        %v422 = vpop.permute.xlu0 %421
        %vm423 = vcmask 64512
        %v424 = vsel %vm423, %v416, 0
        %v426 = vsel %vm423, %v422, 0
        %428 = vmatprep.subr.mxu0 0.0
        %429 = vmatpush1.xpose.msra.mxu0 0.0
        %430 = vmatprep.subr.mxu0 0.0
        %431 = vmatpush1.xpose.msra.mxu0 0.0
        %432 = vmatprep.subr.mxu0 0.0
        %433 = vmatpush1.xpose.msra.mxu0 0.0
        %434 = vmatprep.subr.mxu0 0.0
        %435 = vmatpush1.xpose.msra.mxu0 0.0
        %436 = vmatprep.subr.mxu0 0.0
        %437 = vmatpush1.xpose.msra.mxu0 0.0
        %438 = vmatprep.subr.mxu0 0.0
        %439 = vmatpush1.xpose.msra.mxu0 0.0
        %440 = vmatprep.subr.mxu0 0.0
        %441 = vmatpush1.xpose.msra.mxu0 0.0
        %442 = vmatprep.subr.mxu0 0.0
        %443 = vmatpush1.xpose.msra.mxu0 0.0
        %444 = vmatprep.subr.mxu0 0.0
        %445 = vmatpush1.xpose.msra.mxu0 0.0
        %446 = vmatprep.subr.mxu0 0.0
        %447 = vmatpush1.xpose.msra.mxu0 0.0
        %448 = vmatprep.subr.mxu0 0.0
        %449 = vmatpush1.xpose.msra.mxu0 0.0
        %450 = vmatprep.subr.mxu0 0.0
        %451 = vmatpush1.xpose.msra.mxu0 0.0
        %452 = vmatprep.subr.mxu0 0.0
        %453 = vmatpush1.xpose.msra.mxu0 0.0
        %454 = vmatprep.subr.mxu0 0.0
        %455 = vmatpush1.xpose.msra.mxu0 0.0
        %456 = vmatprep.subr.mxu0 0.0
        %457 = vmatpush1.xpose.msra.mxu0 0.0
        %458 = vmatprep.subr.mxu0 0.0
        %459 = vmatpush1.xpose.msra.mxu0 %v426
        %460 = vmatprep.subr.mxu0 0.0
        %461 = vmatpush2.xpose.msra.mxu0 0.0
        %462 = vmatprep.subr.mxu0 0.0
        %463 = vmatpush2.xpose.msra.mxu0 0.0
        %464 = vmatprep.subr.mxu0 0.0
        %465 = vmatpush2.xpose.msra.mxu0 0.0
        %466 = vmatprep.subr.mxu0 0.0
        %467 = vmatpush2.xpose.msra.mxu0 0.0
        %468 = vmatprep.subr.mxu0 0.0
        %469 = vmatpush2.xpose.msra.mxu0 0.0
        %470 = vmatprep.subr.mxu0 0.0
        %471 = vmatpush2.xpose.msra.mxu0 0.0
        %472 = vmatprep.subr.mxu0 0.0
        %473 = vmatpush2.xpose.msra.mxu0 0.0
        %474 = vmatprep.subr.mxu0 0.0
        %475 = vmatpush2.xpose.msra.mxu0 0.0
        %476 = vmatprep.subr.mxu0 0.0
        %477 = vmatpush2.xpose.msra.mxu0 0.0
        %478 = vmatprep.subr.mxu0 0.0
        %479 = vmatpush2.xpose.msra.mxu0 0.0
        %480 = vmatprep.subr.mxu0 0.0
        %481 = vmatpush2.xpose.msra.mxu0 0.0
        %482 = vmatprep.subr.mxu0 0.0
        %483 = vmatpush2.xpose.msra.mxu0 0.0
        %484 = vmatprep.subr.mxu0 0.0
        %485 = vmatpush2.xpose.msra.mxu0 0.0
        %486 = vmatprep.subr.mxu0 0.0
        %487 = vmatpush2.xpose.msra.mxu0 0.0
        %488 = vmatprep.subr.mxu0 0.0
        %489 = vmatpush2.xpose.msra.mxu0 0.0
        %490 = vmatprep.subr.mxu0 0.0
        %491 = vmatpush2.xpose.msra.mxu0 0.0
        %492 = vmatprep.mubr.f32.mxu0 0.0
        %493 = vmatmul.mubr.f32.gmra.mxu0 %v424
        %v494 = vpop.f32.mrf.mxu0
        %v495 = vadd.f32 %v419, %v494
        %v496 = vpop.f32.mrf.mxu0
        %497 = vdwg.mxu0
        %v498 = vsel %vm423, %v495, -inf
        %499 = vmax.xlane.f32.xlu0 %v498
        %v500 = vpop.xlane.xlu0 %499
        %v501 = vsub.f32 %v495, %v500
        %v502 = vmul.f32 %v501, 1.442695
        %v503 = vpow.pop %v502
        %v504 = vsel %vm423, %v503, 0.0
        %505 = vadd.xlane.f32.xlu0 %v504
        %v506 = vpop.xlane.xlu0 %505
        %v507 = vrcp.pop %v506
        %v508 = vmul.f32 %v503, %v507
        %509 = vrot.lane.b32.xlu0 %v416, 64
        %v510 = vpop.permute.xlu0 %509
        %v513 = vsel %vm423, %v508, 0
        %515 = vmatprep.subr.mxu0 0.0
        %516 = vmatpush1.msra.mxu0 0.0
        %517 = vmatprep.subr.mxu0 0.0
        %518 = vmatpush1.msra.mxu0 0.0
        %519 = vmatprep.subr.mxu0 0.0
        %520 = vmatpush1.msra.mxu0 0.0
        %521 = vmatprep.subr.mxu0 0.0
        %522 = vmatpush1.msra.mxu0 0.0
        %523 = vmatprep.subr.mxu0 0.0
        %524 = vmatpush1.msra.mxu0 0.0
        %525 = vmatprep.subr.mxu0 0.0
        %526 = vmatpush1.msra.mxu0 0.0
        %527 = vmatprep.subr.mxu0 0.0
        %528 = vmatpush1.msra.mxu0 0.0
        %529 = vmatprep.subr.mxu0 0.0
        %530 = vmatpush1.msra.mxu0 0.0
        %531 = vmatprep.subr.mxu0 0.0
        %532 = vmatpush1.msra.mxu0 0.0
        %533 = vmatprep.subr.mxu0 0.0
        %534 = vmatpush1.msra.mxu0 0.0
        %535 = vmatprep.subr.mxu0 0.0
        %536 = vmatpush1.msra.mxu0 0.0
        %537 = vmatprep.subr.mxu0 0.0
        %538 = vmatpush1.msra.mxu0 0.0
        %539 = vmatprep.subr.mxu0 0.0
        %540 = vmatpush1.msra.mxu0 0.0
        %541 = vmatprep.subr.mxu0 0.0
        %542 = vmatpush1.msra.mxu0 0.0
        %543 = vmatprep.subr.mxu0 0.0
        %544 = vmatpush1.msra.mxu0 0.0
        %545 = vmatprep.subr.mxu0 0.0
        %546 = vmatpush1.msra.mxu0 %v510
        %547 = vmatprep.subr.mxu0 0.0
        %548 = vmatpush2.msra.mxu0 0.0
        %549 = vmatprep.subr.mxu0 0.0
        %550 = vmatpush2.msra.mxu0 0.0
        %551 = vmatprep.subr.mxu0 0.0
        %552 = vmatpush2.msra.mxu0 0.0
        %553 = vmatprep.subr.mxu0 0.0
        %554 = vmatpush2.msra.mxu0 0.0
        %555 = vmatprep.subr.mxu0 0.0
        %556 = vmatpush2.msra.mxu0 0.0
        %557 = vmatprep.subr.mxu0 0.0
        %558 = vmatpush2.msra.mxu0 0.0
        %559 = vmatprep.subr.mxu0 0.0
        %560 = vmatpush2.msra.mxu0 0.0
        %561 = vmatprep.subr.mxu0 0.0
        %562 = vmatpush2.msra.mxu0 0.0
        %563 = vmatprep.subr.mxu0 0.0
        %564 = vmatpush2.msra.mxu0 0.0
        %565 = vmatprep.subr.mxu0 0.0
        %566 = vmatpush2.msra.mxu0 0.0
        %567 = vmatprep.subr.mxu0 0.0
        %568 = vmatpush2.msra.mxu0 0.0
        %569 = vmatprep.subr.mxu0 0.0
        %570 = vmatpush2.msra.mxu0 0.0
        %571 = vmatprep.subr.mxu0 0.0
        %572 = vmatpush2.msra.mxu0 0.0
        %573 = vmatprep.subr.mxu0 0.0
        %574 = vmatpush2.msra.mxu0 0.0
        %575 = vmatprep.subr.mxu0 0.0
        %576 = vmatpush2.msra.mxu0 0.0
        %577 = vmatprep.subr.mxu0 0.0
        %578 = vmatpush2.msra.mxu0 0.0
        %579 = vmatprep.mubr.f32.mxu0 0.0
        %580 = vmatmul.mubr.f32.gmra.mxu0 %v513
        %v581 = vpop.f32.mrf.mxu0
        %v582 = vadd.f32 0.0, %v581
        %v583 = vpop.f32.mrf.mxu0
        %584 = vdwg.mxu0
        %585 = vst.msk [vmem:[#allocation2] sm:$0xff] %vm423, %v582
        %586 = vrot.lane.b32.xlu0 %v416, 120
        %v587 = vpop.permute.xlu0 %586
        %588 = vrot.lane.b32.xlu0 %v416, 88
        %v589 = vpop.permute.xlu0 %588
        %v590 = vsel %vm423, %v587, 0
        %v592 = vsel %vm423, %v589, 0
        %594 = vmatprep.subr.mxu0 0.0
        %595 = vmatpush1.xpose.msra.mxu0 0.0
        %596 = vmatprep.subr.mxu0 0.0
        %597 = vmatpush1.xpose.msra.mxu0 0.0
        %598 = vmatprep.subr.mxu0 0.0
        %599 = vmatpush1.xpose.msra.mxu0 0.0
        %600 = vmatprep.subr.mxu0 0.0
        %601 = vmatpush1.xpose.msra.mxu0 0.0
        %602 = vmatprep.subr.mxu0 0.0
        %603 = vmatpush1.xpose.msra.mxu0 0.0
        %604 = vmatprep.subr.mxu0 0.0
        %605 = vmatpush1.xpose.msra.mxu0 0.0
        %606 = vmatprep.subr.mxu0 0.0
        %607 = vmatpush1.xpose.msra.mxu0 0.0
        %608 = vmatprep.subr.mxu0 0.0
        %609 = vmatpush1.xpose.msra.mxu0 0.0
        %610 = vmatprep.subr.mxu0 0.0
        %611 = vmatpush1.xpose.msra.mxu0 0.0
        %612 = vmatprep.subr.mxu0 0.0
        %613 = vmatpush1.xpose.msra.mxu0 0.0
        %614 = vmatprep.subr.mxu0 0.0
        %615 = vmatpush1.xpose.msra.mxu0 0.0
        %616 = vmatprep.subr.mxu0 0.0
        %617 = vmatpush1.xpose.msra.mxu0 0.0
        %618 = vmatprep.subr.mxu0 0.0
        %619 = vmatpush1.xpose.msra.mxu0 0.0
        %620 = vmatprep.subr.mxu0 0.0
        %621 = vmatpush1.xpose.msra.mxu0 0.0
        %622 = vmatprep.subr.mxu0 0.0
        %623 = vmatpush1.xpose.msra.mxu0 0.0
        %624 = vmatprep.subr.mxu0 0.0
        %625 = vmatpush1.xpose.msra.mxu0 %v592
        %626 = vmatprep.subr.mxu0 0.0
        %627 = vmatpush2.xpose.msra.mxu0 0.0
        %628 = vmatprep.subr.mxu0 0.0
        %629 = vmatpush2.xpose.msra.mxu0 0.0
        %630 = vmatprep.subr.mxu0 0.0
        %631 = vmatpush2.xpose.msra.mxu0 0.0
        %632 = vmatprep.subr.mxu0 0.0
        %633 = vmatpush2.xpose.msra.mxu0 0.0
        %634 = vmatprep.subr.mxu0 0.0
        %635 = vmatpush2.xpose.msra.mxu0 0.0
        %636 = vmatprep.subr.mxu0 0.0
        %637 = vmatpush2.xpose.msra.mxu0 0.0
        %638 = vmatprep.subr.mxu0 0.0
        %639 = vmatpush2.xpose.msra.mxu0 0.0
        %640 = vmatprep.subr.mxu0 0.0
        %641 = vmatpush2.xpose.msra.mxu0 0.0
        %642 = vmatprep.subr.mxu0 0.0
        %643 = vmatpush2.xpose.msra.mxu0 0.0
        %644 = vmatprep.subr.mxu0 0.0
        %645 = vmatpush2.xpose.msra.mxu0 0.0
        %646 = vmatprep.subr.mxu0 0.0
        %647 = vmatpush2.xpose.msra.mxu0 0.0
        %648 = vmatprep.subr.mxu0 0.0
        %649 = vmatpush2.xpose.msra.mxu0 0.0
        %650 = vmatprep.subr.mxu0 0.0
        %651 = vmatpush2.xpose.msra.mxu0 0.0
        %652 = vmatprep.subr.mxu0 0.0
        %653 = vmatpush2.xpose.msra.mxu0 0.0
        %654 = vmatprep.subr.mxu0 0.0
        %655 = vmatpush2.xpose.msra.mxu0 0.0
        %656 = vmatprep.subr.mxu0 0.0
        %657 = vmatpush2.xpose.msra.mxu0 0.0
        %658 = vmatprep.mubr.f32.mxu0 0.0
        %659 = vmatmul.mubr.f32.gmra.mxu0 %v590
        %v660 = vpop.f32.mrf.mxu0
        %v661 = vadd.f32 %v419, %v660
        %v662 = vpop.f32.mrf.mxu0
        %663 = vdwg.mxu0
        %v664 = vsel %vm423, %v661, -inf
        %665 = vmax.xlane.f32.xlu0 %v664
        %v666 = vpop.xlane.xlu0 %665
        %v667 = vsub.f32 %v661, %v666
        %v668 = vmul.f32 %v667, 1.442695
        %v669 = vpow.pop %v668
        %v670 = vsel %vm423, %v669, 0.0
        %671 = vadd.xlane.f32.xlu0 %v670
        %v672 = vpop.xlane.xlu0 %671
        %v673 = vrcp.pop %v672
        %v674 = vmul.f32 %v669, %v673
        %675 = vrot.lane.b32.xlu0 %v416, 56
        %v676 = vpop.permute.xlu0 %675
        %v679 = vsel %vm423, %v674, 0
        %681 = vmatprep.subr.mxu0 0.0
        %682 = vmatpush1.msra.mxu0 0.0
        %683 = vmatprep.subr.mxu0 0.0
        %684 = vmatpush1.msra.mxu0 0.0
        %685 = vmatprep.subr.mxu0 0.0
        %686 = vmatpush1.msra.mxu0 0.0
        %687 = vmatprep.subr.mxu0 0.0
        %688 = vmatpush1.msra.mxu0 0.0
        %689 = vmatprep.subr.mxu0 0.0
        %690 = vmatpush1.msra.mxu0 0.0
        %691 = vmatprep.subr.mxu0 0.0
        %692 = vmatpush1.msra.mxu0 0.0
        %693 = vmatprep.subr.mxu0 0.0
        %694 = vmatpush1.msra.mxu0 0.0
        %695 = vmatprep.subr.mxu0 0.0
        %696 = vmatpush1.msra.mxu0 0.0
        %697 = vmatprep.subr.mxu0 0.0
        %698 = vmatpush1.msra.mxu0 0.0
        %699 = vmatprep.subr.mxu0 0.0
        %700 = vmatpush1.msra.mxu0 0.0
        %701 = vmatprep.subr.mxu0 0.0
        %702 = vmatpush1.msra.mxu0 0.0
        %703 = vmatprep.subr.mxu0 0.0
        %704 = vmatpush1.msra.mxu0 0.0
        %705 = vmatprep.subr.mxu0 0.0
        %706 = vmatpush1.msra.mxu0 0.0
        %707 = vmatprep.subr.mxu0 0.0
        %708 = vmatpush1.msra.mxu0 0.0
        %709 = vmatprep.subr.mxu0 0.0
        %710 = vmatpush1.msra.mxu0 0.0
        %711 = vmatprep.subr.mxu0 0.0
        %712 = vmatpush1.msra.mxu0 %v676
        %713 = vmatprep.subr.mxu0 0.0
        %714 = vmatpush2.msra.mxu0 0.0
        %715 = vmatprep.subr.mxu0 0.0
        %716 = vmatpush2.msra.mxu0 0.0
        %717 = vmatprep.subr.mxu0 0.0
        %718 = vmatpush2.msra.mxu0 0.0
        %719 = vmatprep.subr.mxu0 0.0
        %720 = vmatpush2.msra.mxu0 0.0
        %721 = vmatprep.subr.mxu0 0.0
        %722 = vmatpush2.msra.mxu0 0.0
        %723 = vmatprep.subr.mxu0 0.0
        %724 = vmatpush2.msra.mxu0 0.0
        %725 = vmatprep.subr.mxu0 0.0
        %726 = vmatpush2.msra.mxu0 0.0
        %727 = vmatprep.subr.mxu0 0.0
        %728 = vmatpush2.msra.mxu0 0.0
        %729 = vmatprep.subr.mxu0 0.0
        %730 = vmatpush2.msra.mxu0 0.0
        %731 = vmatprep.subr.mxu0 0.0
        %732 = vmatpush2.msra.mxu0 0.0
        %733 = vmatprep.subr.mxu0 0.0
        %734 = vmatpush2.msra.mxu0 0.0
        %735 = vmatprep.subr.mxu0 0.0
        %736 = vmatpush2.msra.mxu0 0.0
        %737 = vmatprep.subr.mxu0 0.0
        %738 = vmatpush2.msra.mxu0 0.0
        %739 = vmatprep.subr.mxu0 0.0
        %740 = vmatpush2.msra.mxu0 0.0
        %741 = vmatprep.subr.mxu0 0.0
        %742 = vmatpush2.msra.mxu0 0.0
        %743 = vmatprep.subr.mxu0 0.0
        %744 = vmatpush2.msra.mxu0 0.0
        %745 = vmatprep.mubr.f32.mxu0 0.0
        %746 = vmatmul.mubr.f32.gmra.mxu0 %v679
        %v747 = vpop.f32.mrf.mxu0
        %v748 = vadd.f32 0.0, %v747
        %v749 = vpop.f32.mrf.mxu0
        %750 = vdwg.mxu0
        %752 = vrot.lane.b32.xlu0 %v748, 8
        %v753 = vpop.permute.xlu0 %752
        %vm755 = vcmask 130112
        %756 = vst.msk [vmem:[#allocation2] sm:$0xff] %vm755, %v753
        %757 = vrot.lane.b32.xlu0 %v416, 112
        %v758 = vpop.permute.xlu0 %757
        %759 = vrot.lane.b32.xlu0 %v416, 80
        %v760 = vpop.permute.xlu0 %759
        %v761 = vsel %vm423, %v758, 0
        %v763 = vsel %vm423, %v760, 0
        %765 = vmatprep.subr.mxu0 0.0
        %766 = vmatpush1.xpose.msra.mxu0 0.0
        %767 = vmatprep.subr.mxu0 0.0
        %768 = vmatpush1.xpose.msra.mxu0 0.0
        %769 = vmatprep.subr.mxu0 0.0
        %770 = vmatpush1.xpose.msra.mxu0 0.0
        %771 = vmatprep.subr.mxu0 0.0
        %772 = vmatpush1.xpose.msra.mxu0 0.0
        %773 = vmatprep.subr.mxu0 0.0
        %774 = vmatpush1.xpose.msra.mxu0 0.0
        %775 = vmatprep.subr.mxu0 0.0
        %776 = vmatpush1.xpose.msra.mxu0 0.0
        %777 = vmatprep.subr.mxu0 0.0
        %778 = vmatpush1.xpose.msra.mxu0 0.0
        %779 = vmatprep.subr.mxu0 0.0
        %780 = vmatpush1.xpose.msra.mxu0 0.0
        %781 = vmatprep.subr.mxu0 0.0
        %782 = vmatpush1.xpose.msra.mxu0 0.0
        %783 = vmatprep.subr.mxu0 0.0
        %784 = vmatpush1.xpose.msra.mxu0 0.0
        %785 = vmatprep.subr.mxu0 0.0
        %786 = vmatpush1.xpose.msra.mxu0 0.0
        %787 = vmatprep.subr.mxu0 0.0
        %788 = vmatpush1.xpose.msra.mxu0 0.0
        %789 = vmatprep.subr.mxu0 0.0
        %790 = vmatpush1.xpose.msra.mxu0 0.0
        %791 = vmatprep.subr.mxu0 0.0
        %792 = vmatpush1.xpose.msra.mxu0 0.0
        %793 = vmatprep.subr.mxu0 0.0
        %794 = vmatpush1.xpose.msra.mxu0 0.0
        %795 = vmatprep.subr.mxu0 0.0
        %796 = vmatpush1.xpose.msra.mxu0 %v763
        %797 = vmatprep.subr.mxu0 0.0
        %798 = vmatpush2.xpose.msra.mxu0 0.0
        %799 = vmatprep.subr.mxu0 0.0
        %800 = vmatpush2.xpose.msra.mxu0 0.0
        %801 = vmatprep.subr.mxu0 0.0
        %802 = vmatpush2.xpose.msra.mxu0 0.0
        %803 = vmatprep.subr.mxu0 0.0
        %804 = vmatpush2.xpose.msra.mxu0 0.0
        %805 = vmatprep.subr.mxu0 0.0
        %806 = vmatpush2.xpose.msra.mxu0 0.0
        %807 = vmatprep.subr.mxu0 0.0
        %808 = vmatpush2.xpose.msra.mxu0 0.0
        %809 = vmatprep.subr.mxu0 0.0
        %810 = vmatpush2.xpose.msra.mxu0 0.0
        %811 = vmatprep.subr.mxu0 0.0
        %812 = vmatpush2.xpose.msra.mxu0 0.0
        %813 = vmatprep.subr.mxu0 0.0
        %814 = vmatpush2.xpose.msra.mxu0 0.0
        %815 = vmatprep.subr.mxu0 0.0
        %816 = vmatpush2.xpose.msra.mxu0 0.0
        %817 = vmatprep.subr.mxu0 0.0
        %818 = vmatpush2.xpose.msra.mxu0 0.0
        %819 = vmatprep.subr.mxu0 0.0
        %820 = vmatpush2.xpose.msra.mxu0 0.0
        %821 = vmatprep.subr.mxu0 0.0
        %822 = vmatpush2.xpose.msra.mxu0 0.0
        %823 = vmatprep.subr.mxu0 0.0
        %824 = vmatpush2.xpose.msra.mxu0 0.0
        %825 = vmatprep.subr.mxu0 0.0
        %826 = vmatpush2.xpose.msra.mxu0 0.0
        %827 = vmatprep.subr.mxu0 0.0
        %828 = vmatpush2.xpose.msra.mxu0 0.0
        %829 = vmatprep.mubr.f32.mxu0 0.0
        %830 = vmatmul.mubr.f32.gmra.mxu0 %v761
        %v831 = vpop.f32.mrf.mxu0
        %v832 = vadd.f32 %v419, %v831
        %v833 = vpop.f32.mrf.mxu0
        %834 = vdwg.mxu0
        %v835 = vsel %vm423, %v832, -inf
        %836 = vmax.xlane.f32.xlu0 %v835
        %v837 = vpop.xlane.xlu0 %836
        %v838 = vsub.f32 %v832, %v837
        %v839 = vmul.f32 %v838, 1.442695
        %v840 = vpow.pop %v839
        %v841 = vsel %vm423, %v840, 0.0
        %842 = vadd.xlane.f32.xlu0 %v841
        %v843 = vpop.xlane.xlu0 %842
        %v844 = vrcp.pop %v843
        %v845 = vmul.f32 %v840, %v844
        %846 = vrot.lane.b32.xlu0 %v416, 48
        %v847 = vpop.permute.xlu0 %846
        %v850 = vsel %vm423, %v845, 0
        %852 = vmatprep.subr.mxu0 0.0
        %853 = vmatpush1.msra.mxu0 0.0
        %854 = vmatprep.subr.mxu0 0.0
        %855 = vmatpush1.msra.mxu0 0.0
        %856 = vmatprep.subr.mxu0 0.0
        %857 = vmatpush1.msra.mxu0 0.0
        %858 = vmatprep.subr.mxu0 0.0
        %859 = vmatpush1.msra.mxu0 0.0
        %860 = vmatprep.subr.mxu0 0.0
        %861 = vmatpush1.msra.mxu0 0.0
        %862 = vmatprep.subr.mxu0 0.0
        %863 = vmatpush1.msra.mxu0 0.0
        %864 = vmatprep.subr.mxu0 0.0
        %865 = vmatpush1.msra.mxu0 0.0
        %866 = vmatprep.subr.mxu0 0.0
        %867 = vmatpush1.msra.mxu0 0.0
        %868 = vmatprep.subr.mxu0 0.0
        %869 = vmatpush1.msra.mxu0 0.0
        %870 = vmatprep.subr.mxu0 0.0
        %871 = vmatpush1.msra.mxu0 0.0
        %872 = vmatprep.subr.mxu0 0.0
        %873 = vmatpush1.msra.mxu0 0.0
        %874 = vmatprep.subr.mxu0 0.0
        %875 = vmatpush1.msra.mxu0 0.0
        %876 = vmatprep.subr.mxu0 0.0
        %877 = vmatpush1.msra.mxu0 0.0
        %878 = vmatprep.subr.mxu0 0.0
        %879 = vmatpush1.msra.mxu0 0.0
        %880 = vmatprep.subr.mxu0 0.0
        %881 = vmatpush1.msra.mxu0 0.0
        %882 = vmatprep.subr.mxu0 0.0
        %883 = vmatpush1.msra.mxu0 %v847
        %884 = vmatprep.subr.mxu0 0.0
        %885 = vmatpush2.msra.mxu0 0.0
        %886 = vmatprep.subr.mxu0 0.0
        %887 = vmatpush2.msra.mxu0 0.0
        %888 = vmatprep.subr.mxu0 0.0
        %889 = vmatpush2.msra.mxu0 0.0
        %890 = vmatprep.subr.mxu0 0.0
        %891 = vmatpush2.msra.mxu0 0.0
        %892 = vmatprep.subr.mxu0 0.0
        %893 = vmatpush2.msra.mxu0 0.0
        %894 = vmatprep.subr.mxu0 0.0
        %895 = vmatpush2.msra.mxu0 0.0
        %896 = vmatprep.subr.mxu0 0.0
        %897 = vmatpush2.msra.mxu0 0.0
        %898 = vmatprep.subr.mxu0 0.0
        %899 = vmatpush2.msra.mxu0 0.0
        %900 = vmatprep.subr.mxu0 0.0
        %901 = vmatpush2.msra.mxu0 0.0
        %902 = vmatprep.subr.mxu0 0.0
        %903 = vmatpush2.msra.mxu0 0.0
        %904 = vmatprep.subr.mxu0 0.0
        %905 = vmatpush2.msra.mxu0 0.0
        %906 = vmatprep.subr.mxu0 0.0
        %907 = vmatpush2.msra.mxu0 0.0
        %908 = vmatprep.subr.mxu0 0.0
        %909 = vmatpush2.msra.mxu0 0.0
        %910 = vmatprep.subr.mxu0 0.0
        %911 = vmatpush2.msra.mxu0 0.0
        %912 = vmatprep.subr.mxu0 0.0
        %913 = vmatpush2.msra.mxu0 0.0
        %914 = vmatprep.subr.mxu0 0.0
        %915 = vmatpush2.msra.mxu0 0.0
        %916 = vmatprep.mubr.f32.mxu0 0.0
        %917 = vmatmul.mubr.f32.gmra.mxu0 %v850
        %v918 = vpop.f32.mrf.mxu0
        %v919 = vadd.f32 0.0, %v918
        %v920 = vpop.f32.mrf.mxu0
        %921 = vdwg.mxu0
        %923 = vrot.lane.b32.xlu0 %v919, 16
        %v924 = vpop.permute.xlu0 %923
        %vm926 = vcmask 195712
        %927 = vst.msk [vmem:[#allocation2] sm:$0xff] %vm926, %v924
        %928 = vrot.lane.b32.xlu0 %v416, 104
        %v929 = vpop.permute.xlu0 %928
        %930 = vrot.lane.b32.xlu0 %v416, 72
        %v931 = vpop.permute.xlu0 %930
        %v932 = vsel %vm423, %v929, 0
        %v934 = vsel %vm423, %v931, 0
        %936 = vmatprep.subr.mxu0 0.0
        %937 = vmatpush1.xpose.msra.mxu0 0.0
        %938 = vmatprep.subr.mxu0 0.0
        %939 = vmatpush1.xpose.msra.mxu0 0.0
        %940 = vmatprep.subr.mxu0 0.0
        %941 = vmatpush1.xpose.msra.mxu0 0.0
        %942 = vmatprep.subr.mxu0 0.0
        %943 = vmatpush1.xpose.msra.mxu0 0.0
        %944 = vmatprep.subr.mxu0 0.0
        %945 = vmatpush1.xpose.msra.mxu0 0.0
        %946 = vmatprep.subr.mxu0 0.0
        %947 = vmatpush1.xpose.msra.mxu0 0.0
        %948 = vmatprep.subr.mxu0 0.0
        %949 = vmatpush1.xpose.msra.mxu0 0.0
        %950 = vmatprep.subr.mxu0 0.0
        %951 = vmatpush1.xpose.msra.mxu0 0.0
        %952 = vmatprep.subr.mxu0 0.0
        %953 = vmatpush1.xpose.msra.mxu0 0.0
        %954 = vmatprep.subr.mxu0 0.0
        %955 = vmatpush1.xpose.msra.mxu0 0.0
        %956 = vmatprep.subr.mxu0 0.0
        %957 = vmatpush1.xpose.msra.mxu0 0.0
        %958 = vmatprep.subr.mxu0 0.0
        %959 = vmatpush1.xpose.msra.mxu0 0.0
        %960 = vmatprep.subr.mxu0 0.0
        %961 = vmatpush1.xpose.msra.mxu0 0.0
        %962 = vmatprep.subr.mxu0 0.0
        %963 = vmatpush1.xpose.msra.mxu0 0.0
        %964 = vmatprep.subr.mxu0 0.0
        %965 = vmatpush1.xpose.msra.mxu0 0.0
        %966 = vmatprep.subr.mxu0 0.0
        %967 = vmatpush1.xpose.msra.mxu0 %v934
        %968 = vmatprep.subr.mxu0 0.0
        %969 = vmatpush2.xpose.msra.mxu0 0.0
        %970 = vmatprep.subr.mxu0 0.0
        %971 = vmatpush2.xpose.msra.mxu0 0.0
        %972 = vmatprep.subr.mxu0 0.0
        %973 = vmatpush2.xpose.msra.mxu0 0.0
        %974 = vmatprep.subr.mxu0 0.0
        %975 = vmatpush2.xpose.msra.mxu0 0.0
        %976 = vmatprep.subr.mxu0 0.0
        %977 = vmatpush2.xpose.msra.mxu0 0.0
        %978 = vmatprep.subr.mxu0 0.0
        %979 = vmatpush2.xpose.msra.mxu0 0.0
        %980 = vmatprep.subr.mxu0 0.0
        %981 = vmatpush2.xpose.msra.mxu0 0.0
        %982 = vmatprep.subr.mxu0 0.0
        %983 = vmatpush2.xpose.msra.mxu0 0.0
        %984 = vmatprep.subr.mxu0 0.0
        %985 = vmatpush2.xpose.msra.mxu0 0.0
        %986 = vmatprep.subr.mxu0 0.0
        %987 = vmatpush2.xpose.msra.mxu0 0.0
        %988 = vmatprep.subr.mxu0 0.0
        %989 = vmatpush2.xpose.msra.mxu0 0.0
        %990 = vmatprep.subr.mxu0 0.0
        %991 = vmatpush2.xpose.msra.mxu0 0.0
        %992 = vmatprep.subr.mxu0 0.0
        %993 = vmatpush2.xpose.msra.mxu0 0.0
        %994 = vmatprep.subr.mxu0 0.0
        %995 = vmatpush2.xpose.msra.mxu0 0.0
        %996 = vmatprep.subr.mxu0 0.0
        %997 = vmatpush2.xpose.msra.mxu0 0.0
        %998 = vmatprep.subr.mxu0 0.0
        %999 = vmatpush2.xpose.msra.mxu0 0.0
        %1000 = vmatprep.mubr.f32.mxu0 0.0
        %1001 = vmatmul.mubr.f32.gmra.mxu0 %v932
        %v1002 = vpop.f32.mrf.mxu0
        %v1003 = vadd.f32 %v419, %v1002
        %v1004 = vpop.f32.mrf.mxu0
        %1005 = vdwg.mxu0
        %v1006 = vsel %vm423, %v1003, -inf
        %1007 = vmax.xlane.f32.xlu0 %v1006
        %v1008 = vpop.xlane.xlu0 %1007
        %v1009 = vsub.f32 %v1003, %v1008
        %v1010 = vmul.f32 %v1009, 1.442695
        %v1011 = vpow.pop %v1010
        %v1012 = vsel %vm423, %v1011, 0.0
        %1013 = vadd.xlane.f32.xlu0 %v1012
        %v1014 = vpop.xlane.xlu0 %1013
        %v1015 = vrcp.pop %v1014
        %v1016 = vmul.f32 %v1011, %v1015
        %1017 = vrot.lane.b32.xlu0 %v416, 40
        %v1018 = vpop.permute.xlu0 %1017
        %v1021 = vsel %vm423, %v1016, 0
        %1023 = vmatprep.subr.mxu0 0.0
        %1024 = vmatpush1.msra.mxu0 0.0
        %1025 = vmatprep.subr.mxu0 0.0
        %1026 = vmatpush1.msra.mxu0 0.0
        %1027 = vmatprep.subr.mxu0 0.0
        %1028 = vmatpush1.msra.mxu0 0.0
        %1029 = vmatprep.subr.mxu0 0.0
        %1030 = vmatpush1.msra.mxu0 0.0
        %1031 = vmatprep.subr.mxu0 0.0
        %1032 = vmatpush1.msra.mxu0 0.0
        %1033 = vmatprep.subr.mxu0 0.0
        %1034 = vmatpush1.msra.mxu0 0.0
        %1035 = vmatprep.subr.mxu0 0.0
        %1036 = vmatpush1.msra.mxu0 0.0
        %1037 = vmatprep.subr.mxu0 0.0
        %1038 = vmatpush1.msra.mxu0 0.0
        %1039 = vmatprep.subr.mxu0 0.0
        %1040 = vmatpush1.msra.mxu0 0.0
        %1041 = vmatprep.subr.mxu0 0.0
        %1042 = vmatpush1.msra.mxu0 0.0
        %1043 = vmatprep.subr.mxu0 0.0
        %1044 = vmatpush1.msra.mxu0 0.0
        %1045 = vmatprep.subr.mxu0 0.0
        %1046 = vmatpush1.msra.mxu0 0.0
        %1047 = vmatprep.subr.mxu0 0.0
        %1048 = vmatpush1.msra.mxu0 0.0
        %1049 = vmatprep.subr.mxu0 0.0
        %1050 = vmatpush1.msra.mxu0 0.0
        %1051 = vmatprep.subr.mxu0 0.0
        %1052 = vmatpush1.msra.mxu0 0.0
        %1053 = vmatprep.subr.mxu0 0.0
        %1054 = vmatpush1.msra.mxu0 %v1018
        %1055 = vmatprep.subr.mxu0 0.0
        %1056 = vmatpush2.msra.mxu0 0.0
        %1057 = vmatprep.subr.mxu0 0.0
        %1058 = vmatpush2.msra.mxu0 0.0
        %1059 = vmatprep.subr.mxu0 0.0
        %1060 = vmatpush2.msra.mxu0 0.0
        %1061 = vmatprep.subr.mxu0 0.0
        %1062 = vmatpush2.msra.mxu0 0.0
        %1063 = vmatprep.subr.mxu0 0.0
        %1064 = vmatpush2.msra.mxu0 0.0
        %1065 = vmatprep.subr.mxu0 0.0
        %1066 = vmatpush2.msra.mxu0 0.0
        %1067 = vmatprep.subr.mxu0 0.0
        %1068 = vmatpush2.msra.mxu0 0.0
        %1069 = vmatprep.subr.mxu0 0.0
        %1070 = vmatpush2.msra.mxu0 0.0
        %1071 = vmatprep.subr.mxu0 0.0
        %1072 = vmatpush2.msra.mxu0 0.0
        %1073 = vmatprep.subr.mxu0 0.0
        %1074 = vmatpush2.msra.mxu0 0.0
        %1075 = vmatprep.subr.mxu0 0.0
        %1076 = vmatpush2.msra.mxu0 0.0
        %1077 = vmatprep.subr.mxu0 0.0
        %1078 = vmatpush2.msra.mxu0 0.0
        %1079 = vmatprep.subr.mxu0 0.0
        %1080 = vmatpush2.msra.mxu0 0.0
        %1081 = vmatprep.subr.mxu0 0.0
        %1082 = vmatpush2.msra.mxu0 0.0
        %1083 = vmatprep.subr.mxu0 0.0
        %1084 = vmatpush2.msra.mxu0 0.0
        %1085 = vmatprep.subr.mxu0 0.0
        %1086 = vmatpush2.msra.mxu0 0.0
        %1087 = vmatprep.mubr.f32.mxu0 0.0
        %1088 = vmatmul.mubr.f32.gmra.mxu0 %v1021
        %v1089 = vpop.f32.mrf.mxu0
        %v1090 = vadd.f32 0.0, %v1089
        %v1091 = vpop.f32.mrf.mxu0
        %1092 = vdwg.mxu0
        %1094 = vrot.lane.b32.xlu0 %v1090, 24
        %v1095 = vpop.permute.xlu0 %1094
        %vm1097 = vcmask 261312
        %1098 = vst.msk [vmem:[#allocation2] sm:$0xff] %vm1097, %v1095
        %v1099 = vld [vmem:[#allocation2] sm:$0xff]
        %v1100 = vld [vmem:[#allocation9] sm:$0xff]
        %v1101 = vld [vmem:[#allocation9 + $0x8] sm:$0xff]
        %v1102 = vld [vmem:[#allocation9 + $0x10] sm:$0xff]
        %v1103 = vld [vmem:[#allocation9 + $0x18] sm:$0xff]
        %v1104 = vld [vmem:[%s5] sm:$0x1]
        %v1106 = vlaneseq
        %v1107 = vshrl.u32 %v1106, 7
        %v1108 = vsub.s32 0, %v1107
        %v1109 = vrot.slane %v1104, %v1108
        %v1112 = vsel %vm345, %v1099, 0
        %1114 = vmatprep.subr.mxu0 0.0
        %1115 = vmatpush1.msra.mxu0 0.0
        %1116 = vmatprep.subr.mxu0 0.0
        %1117 = vmatpush1.msra.mxu0 0.0
        %1118 = vmatprep.subr.mxu0 0.0
        %1119 = vmatpush1.msra.mxu0 0.0
        %1120 = vmatprep.subr.mxu0 0.0
        %1121 = vmatpush1.msra.mxu0 0.0
        %1122 = vmatprep.subr.mxu0 0.0
        %1123 = vmatpush1.msra.mxu0 0.0
        %1124 = vmatprep.subr.mxu0 0.0
        %1125 = vmatpush1.msra.mxu0 0.0
        %1126 = vmatprep.subr.mxu0 0.0
        %1127 = vmatpush1.msra.mxu0 0.0
        %1128 = vmatprep.subr.mxu0 0.0
        %1129 = vmatpush1.msra.mxu0 0.0
        %1130 = vmatprep.subr.mxu0 0.0
        %1131 = vmatpush1.msra.mxu0 0.0
        %1132 = vmatprep.subr.mxu0 0.0
        %1133 = vmatpush1.msra.mxu0 0.0
        %1134 = vmatprep.subr.mxu0 0.0
        %1135 = vmatpush1.msra.mxu0 0.0
        %1136 = vmatprep.subr.mxu0 0.0
        %1137 = vmatpush1.msra.mxu0 0.0
        %1138 = vmatprep.subr.mxu0 0.0
        %1139 = vmatpush1.msra.mxu0 %v1103
        %1140 = vmatprep.subr.mxu0 0.0
        %1141 = vmatpush1.msra.mxu0 %v1102
        %1142 = vmatprep.subr.mxu0 0.0
        %1143 = vmatpush1.msra.mxu0 %v1101
        %1144 = vmatprep.subr.mxu0 0.0
        %1145 = vmatpush1.msra.mxu0 %v1100
        %1146 = vmatprep.subr.mxu0 0.0
        %1147 = vmatpush2.msra.mxu0 0.0
        %1148 = vmatprep.subr.mxu0 0.0
        %1149 = vmatpush2.msra.mxu0 0.0
        %1150 = vmatprep.subr.mxu0 0.0
        %1151 = vmatpush2.msra.mxu0 0.0
        %1152 = vmatprep.subr.mxu0 0.0
        %1153 = vmatpush2.msra.mxu0 0.0
        %1154 = vmatprep.subr.mxu0 0.0
        %1155 = vmatpush2.msra.mxu0 0.0
        %1156 = vmatprep.subr.mxu0 0.0
        %1157 = vmatpush2.msra.mxu0 0.0
        %1158 = vmatprep.subr.mxu0 0.0
        %1159 = vmatpush2.msra.mxu0 0.0
        %1160 = vmatprep.subr.mxu0 0.0
        %1161 = vmatpush2.msra.mxu0 0.0
        %1162 = vmatprep.subr.mxu0 0.0
        %1163 = vmatpush2.msra.mxu0 0.0
        %1164 = vmatprep.subr.mxu0 0.0
        %1165 = vmatpush2.msra.mxu0 0.0
        %1166 = vmatprep.subr.mxu0 0.0
        %1167 = vmatpush2.msra.mxu0 0.0
        %1168 = vmatprep.subr.mxu0 0.0
        %1169 = vmatpush2.msra.mxu0 0.0
        %1170 = vmatprep.subr.mxu0 0.0
        %1171 = vmatpush2.msra.mxu0 0.0
        %1172 = vmatprep.subr.mxu0 0.0
        %1173 = vmatpush2.msra.mxu0 0.0
        %1174 = vmatprep.subr.mxu0 0.0
        %1175 = vmatpush2.msra.mxu0 0.0
        %1176 = vmatprep.subr.mxu0 0.0
        %1177 = vmatpush2.msra.mxu0 0.0
        %1178 = vmatprep.mubr.f32.mxu0 0.0
        %1179 = vmatmul.mubr.f32.gmra.mxu0 %v1112
        %v1180 = vpop.f32.mrf.mxu0
        %v1181 = vadd.f32 %v1109, %v1180
        %v1182 = vpop.f32.mrf.mxu0
        %1183 = vdwg.mxu0
        %1184 = vst.msk [vmem:[%s332] sm:$0xff] %vm345, %v1181
        %s1185 = sand.u32 %s171, 1
        %s1186 = scalar_lea.sflag [#allocation5], %s1185
        %s1187 = sand.u32 %s171, 1
        %s1188 = smul.addr %s1187, 8
        %s1189 = scalar_lea.vmem [#allocation11], %s1188
        // Predicated region
        $region61: #{tpu_custom_call.1} parent=43 // pred_check
          %p1190 = pneg %p181
        $region62: #{tpu_custom_call.1} parent=43 // pred_check_branch
          %1192 = sbr.rel (%p1190) target = $region64
        $region63: #{tpu_custom_call.1} parent=43 // pred_region
          %s1194 = ssub.s32 128, 128
          %1195 = vsyncadd %s1186, %s1194
          %s1196 = smul.addr %s27, 128
          %s1197 = scalar_lea.hbm %s6, %s1196
          %s1199 = sshll.u32 %s1189, 4
          %s1200 = int_to_ptr.vmem [resolvable:$true] %s1199
          %1202 = dma.vmem_to_hbm [thread:$0]  %s1200, 128, %s1197, %s1186
        $region64: #{tpu_custom_call.1} parent=43 // pred_fallthru
          _
      $region44: #{tpu_custom_call.1} parent=5 // pred_fallthru
        _
      %p1203 = scmp.le.s32.totalorder 2, %s22
      // Predicated region
      $region65: #{tpu_custom_call.1} parent=5 // pred_check
        %p1204 = pneg %p1203
      $region66: #{tpu_custom_call.1} parent=5 // pred_check_branch
        %1206 = sbr.rel (%p1204) target = $region68
      $region67: #{tpu_custom_call.1} parent=5 // pred_region
        %s1207 = ssub.s32 %s22, 2
        // Predicated region
        $region69: #{tpu_custom_call.1} parent=67 // pred_check
          %p1208 = pneg %p187
        $region70: #{tpu_custom_call.1} parent=67 // pred_check_branch
          %1210 = sbr.rel (%p1208) target = $region72
        $region71: #{tpu_custom_call.1} parent=67 // pred_region
          %s1211 = sand.u32 %s172, 1
          %s1212 = scalar_lea.sflag [#allocation5], %s1211
          %s1213 = sand.u32 %s172, 1
          %s1214 = smul.addr %s1213, 8
          %s1215 = scalar_lea.vmem [#allocation11], %s1214
          %1216 = dma.done %s1212, 128
        $region72: #{tpu_custom_call.1} parent=67 // pred_fallthru
          _
      $region68: #{tpu_custom_call.1} parent=5 // pred_fallthru
        _
    $region6: #{tpu_custom_call.1} parent=1 // loop_footer
      %s26 = sadd.s32 1, %s22
    $region7: #{tpu_custom_call.1} parent=1 // loop_footer_branch
      %21 = sbr.rel target = $region3
    $region8: #{tpu_custom_call.1} parent=1 // loop_exit
      _
    %1217 = vsyncpa [#allocation4], 1
    %s1218 = scalar_lea.sflag [#allocation4], 1
    %1219 = vsyncpa %s1218, 1
    %1220 = vsyncpa [#allocation7], 1
    %s1221 = scalar_lea.sflag [#allocation7], 1
    %1222 = vsyncpa %s1221, 1
    %1223 = vsyncpa [#allocation10], 1
    %1224 = vsyncpa [#allocation5], 1
    %s1225 = scalar_lea.sflag [#allocation5], 1
    %1226 = vsyncpa %s1225, 1

// kernel: tpu_custom_call.1
$region0: #{tpu_custom_call.1}
  #allocation0 [shape = 'u32[]', space=smem, size = 0x4, offset = 0x4, fixed_abs, tag = 'smem constant byte address 0x4 - core index']
  #allocation1 [shape = 'u32[144,128]{1,0:T(1,128)}', space=vmem, size = 0x12000, scoped, tag = 'internal scratch']
  #allocation2 [shape = 'f32[8,32]{1,0:T(8,128)}', space=vmem, size = 0x1000, scoped, tag = 'scratch operand']
  %s0 = inlined_call_operand.hbm [shape: f32[2,8,32], index: 0, kind: input, shape index: {}]
  %s1 = inlined_call_operand.hbm [shape: f32[2,8,8], index: 1, kind: input, shape index: {}]
  %s2 = inlined_call_operand.hbm [shape: f32[32,96], index: 2, kind: input, shape index: {}]
  %s3 = inlined_call_operand.vmem [shape: f32[1,96], index: 3, kind: input, shape index: {}]
  %s4 = inlined_call_operand.hbm [shape: f32[32,32], index: 4, kind: input, shape index: {}]
  %s5 = inlined_call_operand.vmem [shape: f32[1,32], index: 5, kind: input, shape index: {}]
  %s6 = inlined_call_operand.hbm [shape: f32[2,8,32], index: 6, kind: output, shape index: {}]
  %s7 = sld [smem:[#allocation0]]
  $region73: #{tpu_custom_call.1} parent=0
    _
  %s9 = ssub.s32 1, %s7
  %s10 = scalar_select 0, %s9, %s7
  $region1: #{tpu_custom_call.1} parent=0
    #allocation3 [shape = 'u8[8192]{0}', space=vmem, size = 0x2000, scoped, tag = 'input window, operand 0']
    #allocation4 [shape = 's32[2]{0}', space=sflag, size = 0x8, scoped, tag = 'scoped memory for tpu_custom_call.1']
    #allocation5 [shape = 's32[2]{0}', space=sflag, size = 0x8, scoped, tag = 'scoped memory for tpu_custom_call.1']
    #allocation6 [shape = 'u8[8192]{0}', space=vmem, size = 0x2000, scoped, tag = 'input window, operand 1']
    #allocation7 [shape = 's32[2]{0}', space=sflag, size = 0x8, scoped, tag = 'scoped memory for tpu_custom_call.1']
    #allocation8 [shape = 'u8[16384]{0}', space=vmem, size = 0x4000, scoped, tag = 'input window, operand 2, single buffered']
    #allocation9 [shape = 'u8[16384]{0}', space=vmem, size = 0x4000, scoped, tag = 'input window, operand 4, single buffered']
    #allocation10 [shape = 's32[1]{0}', space=sflag, size = 0x4, scoped, tag = 'scoped memory for tpu_custom_call.1']
    #allocation11 [shape = 'u8[8192]{0}', space=vmem, size = 0x2000, scoped, tag = 'output window, operand 0']
    %11 = vsyncpa [#allocation4], 0
    %s12 = scalar_lea.sflag [#allocation4], 1
    %13 = vsyncpa %s12, 0
    %14 = vsyncpa [#allocation7], 0
    %s15 = scalar_lea.sflag [#allocation7], 1
    %16 = vsyncpa %s15, 0
    %17 = vsyncpa [#allocation10], 0
    %18 = vsyncpa [#allocation5], 0
    %s19 = scalar_lea.sflag [#allocation5], 1
    %20 = vsyncpa %s19, 0
    loop: start=0, step=1, limit=4
    $region2: #{tpu_custom_call.1} parent=1 // loop_pre_header
      _
    $region3: #{tpu_custom_call.1} parent=1 // loop_header
      %s22 = sphi 0, %s26
      %p23 = scmp.ge.s32.totalorder %s22, 4
      %s32 = sphi 0, %s34
      %s35 = sphi 0, %s32
      %s36 = sphi 0, %s35
      %s52 = sphi 0, %s36
      %s58 = sphi 0, %s60
      %s61 = sphi 0, %s58
      %s62 = sphi 0, %s61
      %s78 = sphi 0, %s62
      %s82 = sphi 0, %s82
      %s84 = sphi 0, %s82
      %s85 = sphi 0, %s84
      %s99 = sphi 0, %s85
      %s103 = sphi 0, %s103
      %s105 = sphi 0, %s103
      %s106 = sphi 0, %s105
      %s120 = sphi 0, %s106
      %s124 = sphi 0, %s124
      %s126 = sphi 0, %s124
      %s127 = sphi 0, %s126
      %s141 = sphi 0, %s127
      %s145 = sphi 0, %s145
      %s147 = sphi 0, %s145
      %s148 = sphi 0, %s147
      %s162 = sphi 0, %s148
      %s168 = sphi 0, %s170
      %s171 = sphi 0, %s168
      %s172 = sphi 0, %s171
      %s188 = sphi 0, %s172
    $region4: #{tpu_custom_call.1} parent=1 // loop_header_branch
      %25 = sbr.rel (%p23) target = $region8
    $region5: #{tpu_custom_call.1} parent=1 // loop_body
      %s27 = ssub.s32 %s22, 1
      %s28 = ssub.s32 %s22, 2
      %s29 = sadd.s32 %s22, 1
      %s30 = ssub.s32 %s22, %s29
      %p31 = scmp.eq.s32.totalorder %s30, 0
      %s33 = sadd.s32 %s32, 1
      %s34 = scalar_select %p31, %s32, %s33
      %p37 = pneg %p31
      %p38 = scmp.eq.s32.totalorder %s22, 1
      %p39 = por %p37, %p38
      %p40 = scmp.ne.s32.totalorder %s32, %s35
      %p41 = scmp.eq.s32.totalorder %s22, 0
      %p42 = por %p40, %p41
      %p43 = scmp.ne.s32.totalorder %s32, %s35
      %p44 = scmp.eq.s32.totalorder %s27, 1
      %p45 = por %p43, %p44
      %p46 = scmp.ne.s32.totalorder %s35, %s36
      %p47 = scmp.eq.s32.totalorder %s27, 0
      %p48 = por %p46, %p47
      %p49 = scmp.ne.s32.totalorder %s35, %s36
      %p50 = scmp.eq.s32.totalorder %s28, 1
      %p51 = por %p49, %p50
      %p53 = scmp.ne.s32.totalorder %s36, %s52
      %p54 = scmp.eq.s32.totalorder %s28, 0
      %p55 = por %p53, %p54
      %s56 = ssub.s32 %s22, %s29
      %p57 = scmp.eq.s32.totalorder %s56, 0
      %s59 = sadd.s32 %s58, 1
      %s60 = scalar_select %p57, %s58, %s59
      %p63 = pneg %p57
      %p64 = scmp.eq.s32.totalorder %s22, 1
      %p65 = por %p63, %p64
      %p66 = scmp.ne.s32.totalorder %s58, %s61
      %p67 = scmp.eq.s32.totalorder %s22, 0
      %p68 = por %p66, %p67
      %p69 = scmp.ne.s32.totalorder %s58, %s61
      %p70 = scmp.eq.s32.totalorder %s27, 1
      %p71 = por %p69, %p70
      %p72 = scmp.ne.s32.totalorder %s61, %s62
      %p73 = scmp.eq.s32.totalorder %s27, 0
      %p74 = por %p72, %p73
      %p75 = scmp.ne.s32.totalorder %s61, %s62
      %p76 = scmp.eq.s32.totalorder %s28, 1
      %p77 = por %p75, %p76
      %p79 = scmp.ne.s32.totalorder %s62, %s78
      %p80 = scmp.eq.s32.totalorder %s28, 0
      %p81 = por %p79, %p80
      %s83 = sadd.s32 %s82, 1
      %p86 = scmp.eq.s32.totalorder %s22, 1
      %p87 = scmp.ne.s32.totalorder %s82, %s84
      %p88 = scmp.eq.s32.totalorder %s22, 0
      %p89 = por %p87, %p88
      %p90 = scmp.ne.s32.totalorder %s82, %s84
      %p91 = scmp.eq.s32.totalorder %s27, 1
      %p92 = por %p90, %p91
      %p93 = scmp.ne.s32.totalorder %s84, %s85
      %p94 = scmp.eq.s32.totalorder %s27, 0
      %p95 = por %p93, %p94
      %p96 = scmp.ne.s32.totalorder %s84, %s85
      %p97 = scmp.eq.s32.totalorder %s28, 1
      %p98 = por %p96, %p97
      %p100 = scmp.ne.s32.totalorder %s85, %s99
      %p101 = scmp.eq.s32.totalorder %s28, 0
      %p102 = por %p100, %p101
      %s104 = sadd.s32 %s103, 1
      %p107 = scmp.eq.s32.totalorder %s22, 1
      %p108 = scmp.ne.s32.totalorder %s103, %s105
      %p109 = scmp.eq.s32.totalorder %s22, 0
      %p110 = por %p108, %p109
      %p111 = scmp.ne.s32.totalorder %s103, %s105
      %p112 = scmp.eq.s32.totalorder %s27, 1
      %p113 = por %p111, %p112
      %p114 = scmp.ne.s32.totalorder %s105, %s106
      %p115 = scmp.eq.s32.totalorder %s27, 0
      %p116 = por %p114, %p115
      %p117 = scmp.ne.s32.totalorder %s105, %s106
      %p118 = scmp.eq.s32.totalorder %s28, 1
      %p119 = por %p117, %p118
      %p121 = scmp.ne.s32.totalorder %s106, %s120
      %p122 = scmp.eq.s32.totalorder %s28, 0
      %p123 = por %p121, %p122
      %s125 = sadd.s32 %s124, 1
      %p128 = scmp.eq.s32.totalorder %s22, 1
      %p129 = scmp.ne.s32.totalorder %s124, %s126
      %p130 = scmp.eq.s32.totalorder %s22, 0
      %p131 = por %p129, %p130
      %p132 = scmp.ne.s32.totalorder %s124, %s126
      %p133 = scmp.eq.s32.totalorder %s27, 1
      %p134 = por %p132, %p133
      %p135 = scmp.ne.s32.totalorder %s126, %s127
      %p136 = scmp.eq.s32.totalorder %s27, 0
      %p137 = por %p135, %p136
      %p138 = scmp.ne.s32.totalorder %s126, %s127
      %p139 = scmp.eq.s32.totalorder %s28, 1
      %p140 = por %p138, %p139
      %p142 = scmp.ne.s32.totalorder %s127, %s141
      %p143 = scmp.eq.s32.totalorder %s28, 0
      %p144 = por %p142, %p143
      %s146 = sadd.s32 %s145, 1
      %p149 = scmp.eq.s32.totalorder %s22, 1
      %p150 = scmp.ne.s32.totalorder %s145, %s147
      %p151 = scmp.eq.s32.totalorder %s22, 0
      %p152 = por %p150, %p151
      %p153 = scmp.ne.s32.totalorder %s145, %s147
      %p154 = scmp.eq.s32.totalorder %s27, 1
      %p155 = por %p153, %p154
      %p156 = scmp.ne.s32.totalorder %s147, %s148
      %p157 = scmp.eq.s32.totalorder %s27, 0
      %p158 = por %p156, %p157
      %p159 = scmp.ne.s32.totalorder %s147, %s148
      %p160 = scmp.eq.s32.totalorder %s28, 1
      %p161 = por %p159, %p160
      %p163 = scmp.ne.s32.totalorder %s148, %s162
      %p164 = scmp.eq.s32.totalorder %s28, 0
      %p165 = por %p163, %p164
      %s166 = ssub.s32 %s22, %s29
      %p167 = scmp.eq.s32.totalorder %s166, 0
      %s169 = sadd.s32 %s168, 1
      %s170 = scalar_select %p167, %s168, %s169
      %p173 = pneg %p167
      %p174 = scmp.eq.s32.totalorder %s22, 1
      %p175 = por %p173, %p174
      %p176 = scmp.ne.s32.totalorder %s168, %s171
      %p177 = scmp.eq.s32.totalorder %s22, 0
      %p178 = por %p176, %p177
      %p179 = scmp.ne.s32.totalorder %s168, %s171
      %p180 = scmp.eq.s32.totalorder %s27, 1
      %p181 = por %p179, %p180
      %p182 = scmp.ne.s32.totalorder %s171, %s172
      %p183 = scmp.eq.s32.totalorder %s27, 0
      %p184 = por %p182, %p183
      %p185 = scmp.ne.s32.totalorder %s171, %s172
      %p186 = scmp.eq.s32.totalorder %s28, 1
      %p187 = por %p185, %p186
      %p189 = scmp.ne.s32.totalorder %s172, %s188
      %p190 = scmp.eq.s32.totalorder %s28, 0
      %p191 = por %p189, %p190
      %p192 = scmp.le.s32.totalorder 1, %s22
      %p193 = scmp.lt.s32.totalorder %s22, 3
      %p194 = pnand %p192, %p193
      %p195 = pneg %p194
      // Predicated region
      $region9: #{tpu_custom_call.1} parent=5 // pred_check
        _
      $region10: #{tpu_custom_call.1} parent=5 // pred_check_branch
        %197 = sbr.rel (%p194) target = $region12
      $region11: #{tpu_custom_call.1} parent=5 // pred_region
        %s198 = ssub.s32 %s22, 1
        // Predicated region
        $region13: #{tpu_custom_call.1} parent=11 // pred_check
          %p199 = pneg %p95
        $region14: #{tpu_custom_call.1} parent=11 // pred_check_branch
          %201 = sbr.rel (%p199) target = $region16
        $region15: #{tpu_custom_call.1} parent=11 // pred_region
          %s203 = ssub.s32 512, 512
          %204 = vsyncadd [#allocation7], %s203
          %s205 = sshll.u32 [#allocation8], 4
          %s206 = int_to_ptr.vmem [resolvable:$true] %s205
          %211 = dma.hbm_to_vmem [thread:$0]  %s2, 512, %s206, [#allocation7], 128, 128, 8
        $region16: #{tpu_custom_call.1} parent=11 // pred_fallthru
          _
        // Predicated region
        $region17: #{tpu_custom_call.1} parent=11 // pred_check
          %p212 = pneg %p116
        $region18: #{tpu_custom_call.1} parent=11 // pred_check_branch
          %214 = sbr.rel (%p212) target = $region20
        $region19: #{tpu_custom_call.1} parent=11 // pred_region
          _
        $region20: #{tpu_custom_call.1} parent=11 // pred_fallthru
          _
        // Predicated region
        $region21: #{tpu_custom_call.1} parent=11 // pred_check
          %p215 = pneg %p137
        $region22: #{tpu_custom_call.1} parent=11 // pred_check_branch
          %217 = sbr.rel (%p215) target = $region24
        $region23: #{tpu_custom_call.1} parent=11 // pred_region
          %s219 = ssub.s32 512, 512
          %220 = vsyncadd [#allocation10], %s219
          %s221 = sshll.u32 [#allocation9], 4
          %s222 = int_to_ptr.vmem [resolvable:$true] %s221
          %227 = dma.hbm_to_vmem [thread:$0]  %s4, 512, %s222, [#allocation10], 128, 128, 8
        $region24: #{tpu_custom_call.1} parent=11 // pred_fallthru
          _
        // Predicated region
        $region25: #{tpu_custom_call.1} parent=11 // pred_check
          %p228 = pneg %p158
        $region26: #{tpu_custom_call.1} parent=11 // pred_check_branch
          %230 = sbr.rel (%p228) target = $region28
        $region27: #{tpu_custom_call.1} parent=11 // pred_region
          _
        $region28: #{tpu_custom_call.1} parent=11 // pred_fallthru
          _
      $region12: #{tpu_custom_call.1} parent=5 // pred_fallthru
        _
      %p231 = scmp.lt.s32.totalorder %s22, 2
      // Predicated region
      $region29: #{tpu_custom_call.1} parent=5 // pred_check
        %p232 = pneg %p231
      $region30: #{tpu_custom_call.1} parent=5 // pred_check_branch
        %234 = sbr.rel (%p232) target = $region32
      $region31: #{tpu_custom_call.1} parent=5 // pred_region
        // Predicated region
        $region33: #{tpu_custom_call.1} parent=31 // pred_check
          %p235 = pneg %p42
        $region34: #{tpu_custom_call.1} parent=31 // pred_check_branch
          %237 = sbr.rel (%p235) target = $region36
        $region35: #{tpu_custom_call.1} parent=31 // pred_region
          %s238 = sand.u32 %s32, 1
          %s239 = scalar_lea.sflag [#allocation4], %s238
          %s240 = sand.u32 %s32, 1
          %s241 = smul.addr %s240, 8
          %s242 = scalar_lea.vmem [#allocation3], %s241
          %s244 = ssub.s32 128, 128
          %245 = vsyncadd %s239, %s244
          %s246 = smul.addr %s22, 128
          %s247 = scalar_lea.hbm %s0, %s246
          %s249 = sshll.u32 %s242, 4
          %s250 = int_to_ptr.vmem [resolvable:$true] %s249
          %252 = dma.hbm_to_vmem [thread:$0]  %s247, 128, %s250, %s239
        $region36: #{tpu_custom_call.1} parent=31 // pred_fallthru
          _
        // Predicated region
        $region37: #{tpu_custom_call.1} parent=31 // pred_check
          %p253 = pneg %p68
        $region38: #{tpu_custom_call.1} parent=31 // pred_check_branch
          %255 = sbr.rel (%p253) target = $region40
        $region39: #{tpu_custom_call.1} parent=31 // pred_region
          %s256 = sand.u32 %s22, 1
          %s257 = scalar_lea.sflag [#allocation7], %s256
          %s258 = sand.u32 %s58, 1
          %s259 = smul.addr %s258, 8
          %s260 = scalar_lea.vmem [#allocation6], %s259
          %s262 = ssub.s32 128, 128
          %263 = vsyncadd %s257, %s262
          %s264 = smul.addr %s22, 128
          %s265 = scalar_lea.hbm %s1, %s264
          %s267 = sshll.u32 %s260, 4
          %s268 = int_to_ptr.vmem [resolvable:$true] %s267
          %270 = dma.hbm_to_vmem [thread:$0]  %s265, 128, %s268, %s257
        $region40: #{tpu_custom_call.1} parent=31 // pred_fallthru
          _
      $region32: #{tpu_custom_call.1} parent=5 // pred_fallthru
        _
      %p271 = scmp.le.s32.totalorder 1, %s22
      %p272 = scmp.lt.s32.totalorder %s22, 3
      %p273 = pnand %p271, %p272
      %p274 = pneg %p273
      // Predicated region
      $region41: #{tpu_custom_call.1} parent=5 // pred_check
        _
      $region42: #{tpu_custom_call.1} parent=5 // pred_check_branch
        %276 = sbr.rel (%p273) target = $region44
      $region43: #{tpu_custom_call.1} parent=5 // pred_region
        %s277 = ssub.s32 %s22, 1
        %s278 = sand.u32 %s35, 1
        %s279 = scalar_lea.sflag [#allocation4], %s278
        %s280 = sand.u32 %s35, 1
        %s281 = smul.addr %s280, 8
        %s282 = scalar_lea.vmem [#allocation3], %s281
        // Predicated region
        $region45: #{tpu_custom_call.1} parent=43 // pred_check
          %p283 = pneg %p48
        $region46: #{tpu_custom_call.1} parent=43 // pred_check_branch
          %285 = sbr.rel (%p283) target = $region48
        $region47: #{tpu_custom_call.1} parent=43 // pred_region
          %286 = dma.done %s279, 128
        $region48: #{tpu_custom_call.1} parent=43 // pred_fallthru
          _
        %s287 = sand.u32 %s27, 1
        %s288 = scalar_lea.sflag [#allocation7], %s287
        %s289 = sand.u32 %s61, 1
        %s290 = smul.addr %s289, 8
        %s291 = scalar_lea.vmem [#allocation6], %s290
        // Predicated region
        $region49: #{tpu_custom_call.1} parent=43 // pred_check
          %p292 = pneg %p74
        $region50: #{tpu_custom_call.1} parent=43 // pred_check_branch
          %294 = sbr.rel (%p292) target = $region52
        $region51: #{tpu_custom_call.1} parent=43 // pred_region
          %295 = dma.done %s288, 128
        $region52: #{tpu_custom_call.1} parent=43 // pred_fallthru
          _
        // Predicated region
        $region53: #{tpu_custom_call.1} parent=43 // pred_check
          %p296 = pneg %p95
        $region54: #{tpu_custom_call.1} parent=43 // pred_check_branch
          %298 = sbr.rel (%p296) target = $region56
        $region55: #{tpu_custom_call.1} parent=43 // pred_region
          %299 = dma.done [#allocation7], 512
        $region56: #{tpu_custom_call.1} parent=43 // pred_fallthru
          _
        // Predicated region
        $region57: #{tpu_custom_call.1} parent=43 // pred_check
          %p300 = pneg %p137
        $region58: #{tpu_custom_call.1} parent=43 // pred_check_branch
          %302 = sbr.rel (%p300) target = $region60
        $region59: #{tpu_custom_call.1} parent=43 // pred_region
          %303 = dma.done [#allocation10], 512
        $region60: #{tpu_custom_call.1} parent=43 // pred_fallthru
          _
        %s304 = sand.u32 %s35, 1
        %s305 = scalar_lea.sflag [#allocation4], %s304
        %s306 = sand.u32 %s35, 1
        %s307 = smul.addr %s306, 8
        %s308 = scalar_lea.vmem [#allocation3], %s307
        %p309 = pneg %p48
        %p310 = pneg %p45
        %s311 = sand.u32 %s27, 1
        %s312 = scalar_lea.sflag [#allocation7], %s311
        %s313 = sand.u32 %s61, 1
        %s314 = smul.addr %s313, 8
        %s315 = scalar_lea.vmem [#allocation6], %s314
        %p316 = pneg %p74
        %p317 = pneg %p71
        %p318 = pneg %p95
        %p319 = pneg %p92
        %p320 = pneg %p116
        %p321 = pneg %p113
        %p322 = pneg %p137
        %p323 = pneg %p134
        %p324 = pneg %p158
        %p325 = pneg %p155
        %p326 = pneg %p184
        %p327 = pneg %p181
        %s328 = sand.u32 %s171, 1
        %s329 = scalar_lea.sflag [#allocation5], %s328
        %s330 = sand.u32 %s171, 1
        %s331 = smul.addr %s330, 8
        %s332 = scalar_lea.vmem [#allocation11], %s331
        %v333 = vld [vmem:[%s282] sm:$0xff]
        %v334 = vld [vmem:[#allocation8] sm:$0xff]
        %v335 = vld [vmem:[#allocation8 + $0x8] sm:$0xff]
        %v336 = vld [vmem:[#allocation8 + $0x10] sm:$0xff]
        %v337 = vld [vmem:[#allocation8 + $0x18] sm:$0xff]
        %v338 = vld [vmem:[%s3] sm:$0x1]
        %v340 = vlaneseq
        %v341 = vshrl.u32 %v340, 7
        %v342 = vsub.s32 0, %v341
        %v343 = vrot.slane %v338, %v342
        %vm345 = vcmask 261120
        %v347 = vsel %vm345, %v333, 0
        %349 = vmatprep.subr.mxu0 0.0
        %350 = vmatpush1.msra.mxu0 0.0
        %351 = vmatprep.subr.mxu0 0.0
        %352 = vmatpush1.msra.mxu0 0.0
        %353 = vmatprep.subr.mxu0 0.0
        %354 = vmatpush1.msra.mxu0 0.0
        %355 = vmatprep.subr.mxu0 0.0
        %356 = vmatpush1.msra.mxu0 0.0
        %357 = vmatprep.subr.mxu0 0.0
        %358 = vmatpush1.msra.mxu0 0.0
        %359 = vmatprep.subr.mxu0 0.0
        %360 = vmatpush1.msra.mxu0 0.0
        %361 = vmatprep.subr.mxu0 0.0
        %362 = vmatpush1.msra.mxu0 0.0
        %363 = vmatprep.subr.mxu0 0.0
        %364 = vmatpush1.msra.mxu0 0.0
        %365 = vmatprep.subr.mxu0 0.0
        %366 = vmatpush1.msra.mxu0 0.0
        %367 = vmatprep.subr.mxu0 0.0
        %368 = vmatpush1.msra.mxu0 0.0
        %369 = vmatprep.subr.mxu0 0.0
        %370 = vmatpush1.msra.mxu0 0.0
        %371 = vmatprep.subr.mxu0 0.0
        %372 = vmatpush1.msra.mxu0 0.0
        %373 = vmatprep.subr.mxu0 0.0
        %374 = vmatpush1.msra.mxu0 %v337
        %375 = vmatprep.subr.mxu0 0.0
        %376 = vmatpush1.msra.mxu0 %v336
        %377 = vmatprep.subr.mxu0 0.0
        %378 = vmatpush1.msra.mxu0 %v335
        %379 = vmatprep.subr.mxu0 0.0
        %380 = vmatpush1.msra.mxu0 %v334
        %381 = vmatprep.subr.mxu0 0.0
        %382 = vmatpush2.msra.mxu0 0.0
        %383 = vmatprep.subr.mxu0 0.0
        %384 = vmatpush2.msra.mxu0 0.0
        %385 = vmatprep.subr.mxu0 0.0
        %386 = vmatpush2.msra.mxu0 0.0
        %387 = vmatprep.subr.mxu0 0.0
        %388 = vmatpush2.msra.mxu0 0.0
        %389 = vmatprep.subr.mxu0 0.0
        %390 = vmatpush2.msra.mxu0 0.0
        %391 = vmatprep.subr.mxu0 0.0
        %392 = vmatpush2.msra.mxu0 0.0
        %393 = vmatprep.subr.mxu0 0.0
        %394 = vmatpush2.msra.mxu0 0.0
        %395 = vmatprep.subr.mxu0 0.0
        %396 = vmatpush2.msra.mxu0 0.0
        %397 = vmatprep.subr.mxu0 0.0
        %398 = vmatpush2.msra.mxu0 0.0
        %399 = vmatprep.subr.mxu0 0.0
        %400 = vmatpush2.msra.mxu0 0.0
        %401 = vmatprep.subr.mxu0 0.0
        %402 = vmatpush2.msra.mxu0 0.0
        %403 = vmatprep.subr.mxu0 0.0
        %404 = vmatpush2.msra.mxu0 0.0
        %405 = vmatprep.subr.mxu0 0.0
        %406 = vmatpush2.msra.mxu0 0.0
        %407 = vmatprep.subr.mxu0 0.0
        %408 = vmatpush2.msra.mxu0 0.0
        %409 = vmatprep.subr.mxu0 0.0
        %410 = vmatpush2.msra.mxu0 0.0
        %411 = vmatprep.subr.mxu0 0.0
        %412 = vmatpush2.msra.mxu0 0.0
        %413 = vmatprep.mubr.f32.mxu0 0.0
        %414 = vmatmul.mubr.f32.gmra.mxu0 %v347
        %v415 = vpop.f32.mrf.mxu0
        %v416 = vadd.f32 %v343, %v415
        %v417 = vpop.f32.mrf.mxu0
        %418 = vdwg.mxu0
        %v419 = vld [vmem:[%s291] sm:$0xff]
        %421 = vrot.lane.b32.xlu0 %v416, 96
        %v422 = vpop.permute.xlu0 %421
        %vm423 = vcmask 64512
        %v424 = vsel %vm423, %v416, 0
        %v426 = vsel %vm423, %v422, 0
        %428 = vmatprep.subr.mxu0 0.0
        %429 = vmatpush1.xpose.msra.mxu0 0.0
        %430 = vmatprep.subr.mxu0 0.0
        %431 = vmatpush1.xpose.msra.mxu0 0.0
        %432 = vmatprep.subr.mxu0 0.0
        %433 = vmatpush1.xpose.msra.mxu0 0.0
        %434 = vmatprep.subr.mxu0 0.0
        %435 = vmatpush1.xpose.msra.mxu0 0.0
        %436 = vmatprep.subr.mxu0 0.0
        %437 = vmatpush1.xpose.msra.mxu0 0.0
        %438 = vmatprep.subr.mxu0 0.0
        %439 = vmatpush1.xpose.msra.mxu0 0.0
        %440 = vmatprep.subr.mxu0 0.0
        %441 = vmatpush1.xpose.msra.mxu0 0.0
        %442 = vmatprep.subr.mxu0 0.0
        %443 = vmatpush1.xpose.msra.mxu0 0.0
        %444 = vmatprep.subr.mxu0 0.0
        %445 = vmatpush1.xpose.msra.mxu0 0.0
        %446 = vmatprep.subr.mxu0 0.0
        %447 = vmatpush1.xpose.msra.mxu0 0.0
        %448 = vmatprep.subr.mxu0 0.0
        %449 = vmatpush1.xpose.msra.mxu0 0.0
        %450 = vmatprep.subr.mxu0 0.0
        %451 = vmatpush1.xpose.msra.mxu0 0.0
        %452 = vmatprep.subr.mxu0 0.0
        %453 = vmatpush1.xpose.msra.mxu0 0.0
        %454 = vmatprep.subr.mxu0 0.0
        %455 = vmatpush1.xpose.msra.mxu0 0.0
        %456 = vmatprep.subr.mxu0 0.0
        %457 = vmatpush1.xpose.msra.mxu0 0.0
        %458 = vmatprep.subr.mxu0 0.0
        %459 = vmatpush1.xpose.msra.mxu0 %v426
        %460 = vmatprep.subr.mxu0 0.0
        %461 = vmatpush2.xpose.msra.mxu0 0.0
        %462 = vmatprep.subr.mxu0 0.0
        %463 = vmatpush2.xpose.msra.mxu0 0.0
        %464 = vmatprep.subr.mxu0 0.0
        %465 = vmatpush2.xpose.msra.mxu0 0.0
        %466 = vmatprep.subr.mxu0 0.0
        %467 = vmatpush2.xpose.msra.mxu0 0.0
        %468 = vmatprep.subr.mxu0 0.0
        %469 = vmatpush2.xpose.msra.mxu0 0.0
        %470 = vmatprep.subr.mxu0 0.0
        %471 = vmatpush2.xpose.msra.mxu0 0.0
        %472 = vmatprep.subr.mxu0 0.0
        %473 = vmatpush2.xpose.msra.mxu0 0.0
        %474 = vmatprep.subr.mxu0 0.0
        %475 = vmatpush2.xpose.msra.mxu0 0.0
        %476 = vmatprep.subr.mxu0 0.0
        %477 = vmatpush2.xpose.msra.mxu0 0.0
        %478 = vmatprep.subr.mxu0 0.0
        %479 = vmatpush2.xpose.msra.mxu0 0.0
        %480 = vmatprep.subr.mxu0 0.0
        %481 = vmatpush2.xpose.msra.mxu0 0.0
        %482 = vmatprep.subr.mxu0 0.0
        %483 = vmatpush2.xpose.msra.mxu0 0.0
        %484 = vmatprep.subr.mxu0 0.0
        %485 = vmatpush2.xpose.msra.mxu0 0.0
        %486 = vmatprep.subr.mxu0 0.0
        %487 = vmatpush2.xpose.msra.mxu0 0.0
        %488 = vmatprep.subr.mxu0 0.0
        %489 = vmatpush2.xpose.msra.mxu0 0.0
        %490 = vmatprep.subr.mxu0 0.0
        %491 = vmatpush2.xpose.msra.mxu0 0.0
        %492 = vmatprep.mubr.f32.mxu0 0.0
        %493 = vmatmul.mubr.f32.gmra.mxu0 %v424
        %v494 = vpop.f32.mrf.mxu0
        %v495 = vadd.f32 %v419, %v494
        %v496 = vpop.f32.mrf.mxu0
        %497 = vdwg.mxu0
        %v498 = vsel %vm423, %v495, -inf
        %499 = vmax.xlane.f32.xlu0 %v498
        %v500 = vpop.xlane.xlu0 %499
        %v501 = vsub.f32 %v495, %v500
        %v502 = vmul.f32 %v501, 1.442695
        %v503 = vpow.pop %v502
        %v504 = vsel %vm423, %v503, 0.0
        %505 = vadd.xlane.f32.xlu0 %v504
        %v506 = vpop.xlane.xlu0 %505
        %v507 = vrcp.pop %v506
        %v508 = vmul.f32 %v503, %v507
        %509 = vrot.lane.b32.xlu0 %v416, 64
        %v510 = vpop.permute.xlu0 %509
        %v513 = vsel %vm423, %v508, 0
        %515 = vmatprep.subr.mxu0 0.0
        %516 = vmatpush1.msra.mxu0 0.0
        %517 = vmatprep.subr.mxu0 0.0
        %518 = vmatpush1.msra.mxu0 0.0
        %519 = vmatprep.subr.mxu0 0.0
        %520 = vmatpush1.msra.mxu0 0.0
        %521 = vmatprep.subr.mxu0 0.0
        %522 = vmatpush1.msra.mxu0 0.0
        %523 = vmatprep.subr.mxu0 0.0
        %524 = vmatpush1.msra.mxu0 0.0
        %525 = vmatprep.subr.mxu0 0.0
        %526 = vmatpush1.msra.mxu0 0.0
        %527 = vmatprep.subr.mxu0 0.0
        %528 = vmatpush1.msra.mxu0 0.0
        %529 = vmatprep.subr.mxu0 0.0
        %530 = vmatpush1.msra.mxu0 0.0
        %531 = vmatprep.subr.mxu0 0.0
        %532 = vmatpush1.msra.mxu0 0.0
        %533 = vmatprep.subr.mxu0 0.0
        %534 = vmatpush1.msra.mxu0 0.0
        %535 = vmatprep.subr.mxu0 0.0
        %536 = vmatpush1.msra.mxu0 0.0
        %537 = vmatprep.subr.mxu0 0.0
        %538 = vmatpush1.msra.mxu0 0.0
        %539 = vmatprep.subr.mxu0 0.0
        %540 = vmatpush1.msra.mxu0 0.0
        %541 = vmatprep.subr.mxu0 0.0
        %542 = vmatpush1.msra.mxu0 0.0
        %543 = vmatprep.subr.mxu0 0.0
        %544 = vmatpush1.msra.mxu0 0.0
        %545 = vmatprep.subr.mxu0 0.0
        %546 = vmatpush1.msra.mxu0 %v510
        %547 = vmatprep.subr.mxu0 0.0
        %548 = vmatpush2.msra.mxu0 0.0
        %549 = vmatprep.subr.mxu0 0.0
        %550 = vmatpush2.msra.mxu0 0.0
        %551 = vmatprep.subr.mxu0 0.0
        %552 = vmatpush2.msra.mxu0 0.0
        %553 = vmatprep.subr.mxu0 0.0
        %554 = vmatpush2.msra.mxu0 0.0
        %555 = vmatprep.subr.mxu0 0.0
        %556 = vmatpush2.msra.mxu0 0.0
        %557 = vmatprep.subr.mxu0 0.0
        %558 = vmatpush2.msra.mxu0 0.0
        %559 = vmatprep.subr.mxu0 0.0
        %560 = vmatpush2.msra.mxu0 0.0
        %561 = vmatprep.subr.mxu0 0.0
        %562 = vmatpush2.msra.mxu0 0.0
        %563 = vmatprep.subr.mxu0 0.0
        %564 = vmatpush2.msra.mxu0 0.0
        %565 = vmatprep.subr.mxu0 0.0
        %566 = vmatpush2.msra.mxu0 0.0
        %567 = vmatprep.subr.mxu0 0.0
        %568 = vmatpush2.msra.mxu0 0.0
        %569 = vmatprep.subr.mxu0 0.0
        %570 = vmatpush2.msra.mxu0 0.0
        %571 = vmatprep.subr.mxu0 0.0
        %572 = vmatpush2.msra.mxu0 0.0
        %573 = vmatprep.subr.mxu0 0.0
        %574 = vmatpush2.msra.mxu0 0.0
        %575 = vmatprep.subr.mxu0 0.0
        %576 = vmatpush2.msra.mxu0 0.0
        %577 = vmatprep.subr.mxu0 0.0
        %578 = vmatpush2.msra.mxu0 0.0
        %579 = vmatprep.mubr.f32.mxu0 0.0
        %580 = vmatmul.mubr.f32.gmra.mxu0 %v513
        %v581 = vpop.f32.mrf.mxu0
        %v582 = vadd.f32 0.0, %v581
        %v583 = vpop.f32.mrf.mxu0
        %584 = vdwg.mxu0
        %585 = vst.msk [vmem:[#allocation2] sm:$0xff] %vm423, %v582
        %586 = vrot.lane.b32.xlu0 %v416, 120
        %v587 = vpop.permute.xlu0 %586
        %588 = vrot.lane.b32.xlu0 %v416, 88
        %v589 = vpop.permute.xlu0 %588
        %v590 = vsel %vm423, %v587, 0
        %v592 = vsel %vm423, %v589, 0
        %594 = vmatprep.subr.mxu0 0.0
        %595 = vmatpush1.xpose.msra.mxu0 0.0
        %596 = vmatprep.subr.mxu0 0.0
        %597 = vmatpush1.xpose.msra.mxu0 0.0
        %598 = vmatprep.subr.mxu0 0.0
        %599 = vmatpush1.xpose.msra.mxu0 0.0
        %600 = vmatprep.subr.mxu0 0.0
        %601 = vmatpush1.xpose.msra.mxu0 0.0
        %602 = vmatprep.subr.mxu0 0.0
        %603 = vmatpush1.xpose.msra.mxu0 0.0
        %604 = vmatprep.subr.mxu0 0.0
        %605 = vmatpush1.xpose.msra.mxu0 0.0
        %606 = vmatprep.subr.mxu0 0.0
        %607 = vmatpush1.xpose.msra.mxu0 0.0
        %608 = vmatprep.subr.mxu0 0.0
        %609 = vmatpush1.xpose.msra.mxu0 0.0
        %610 = vmatprep.subr.mxu0 0.0
        %611 = vmatpush1.xpose.msra.mxu0 0.0
        %612 = vmatprep.subr.mxu0 0.0
        %613 = vmatpush1.xpose.msra.mxu0 0.0
        %614 = vmatprep.subr.mxu0 0.0
        %615 = vmatpush1.xpose.msra.mxu0 0.0
        %616 = vmatprep.subr.mxu0 0.0
        %617 = vmatpush1.xpose.msra.mxu0 0.0
        %618 = vmatprep.subr.mxu0 0.0
        %619 = vmatpush1.xpose.msra.mxu0 0.0
        %620 = vmatprep.subr.mxu0 0.0
        %621 = vmatpush1.xpose.msra.mxu0 0.0
        %622 = vmatprep.subr.mxu0 0.0
        %623 = vmatpush1.xpose.msra.mxu0 0.0
        %624 = vmatprep.subr.mxu0 0.0
        %625 = vmatpush1.xpose.msra.mxu0 %v592
        %626 = vmatprep.subr.mxu0 0.0
        %627 = vmatpush2.xpose.msra.mxu0 0.0
        %628 = vmatprep.subr.mxu0 0.0
        %629 = vmatpush2.xpose.msra.mxu0 0.0
        %630 = vmatprep.subr.mxu0 0.0
        %631 = vmatpush2.xpose.msra.mxu0 0.0
        %632 = vmatprep.subr.mxu0 0.0
        %633 = vmatpush2.xpose.msra.mxu0 0.0
        %634 = vmatprep.subr.mxu0 0.0
        %635 = vmatpush2.xpose.msra.mxu0 0.0
        %636 = vmatprep.subr.mxu0 0.0
        %637 = vmatpush2.xpose.msra.mxu0 0.0
        %638 = vmatprep.subr.mxu0 0.0
        %639 = vmatpush2.xpose.msra.mxu0 0.0
        %640 = vmatprep.subr.mxu0 0.0
        %641 = vmatpush2.xpose.msra.mxu0 0.0
        %642 = vmatprep.subr.mxu0 0.0
        %643 = vmatpush2.xpose.msra.mxu0 0.0
        %644 = vmatprep.subr.mxu0 0.0
        %645 = vmatpush2.xpose.msra.mxu0 0.0
        %646 = vmatprep.subr.mxu0 0.0
        %647 = vmatpush2.xpose.msra.mxu0 0.0
        %648 = vmatprep.subr.mxu0 0.0
        %649 = vmatpush2.xpose.msra.mxu0 0.0
        %650 = vmatprep.subr.mxu0 0.0
        %651 = vmatpush2.xpose.msra.mxu0 0.0
        %652 = vmatprep.subr.mxu0 0.0
        %653 = vmatpush2.xpose.msra.mxu0 0.0
        %654 = vmatprep.subr.mxu0 0.0
        %655 = vmatpush2.xpose.msra.mxu0 0.0
        %656 = vmatprep.subr.mxu0 0.0
        %657 = vmatpush2.xpose.msra.mxu0 0.0
        %658 = vmatprep.mubr.f32.mxu0 0.0
        %659 = vmatmul.mubr.f32.gmra.mxu0 %v590
        %v660 = vpop.f32.mrf.mxu0
        %v661 = vadd.f32 %v419, %v660
        %v662 = vpop.f32.mrf.mxu0
        %663 = vdwg.mxu0
        %v664 = vsel %vm423, %v661, -inf
        %665 = vmax.xlane.f32.xlu0 %v664
        %v666 = vpop.xlane.xlu0 %665
        %v667 = vsub.f32 %v661, %v666
        %v668 = vmul.f32 %v667, 1.442695
        %v669 = vpow.pop %v668
        %v670 = vsel %vm423, %v669, 0.0
        %671 = vadd.xlane.f32.xlu0 %v670
        %v672 = vpop.xlane.xlu0 %671
        %v673 = vrcp.pop %v672
        %v674 = vmul.f32 %v669, %v673
        %675 = vrot.lane.b32.xlu0 %v416, 56
        %v676 = vpop.permute.xlu0 %675
        %v679 = vsel %vm423, %v674, 0
        %681 = vmatprep.subr.mxu0 0.0
        %682 = vmatpush1.msra.mxu0 0.0
        %683 = vmatprep.subr.mxu0 0.0
        %684 = vmatpush1.msra.mxu0 0.0
        %685 = vmatprep.subr.mxu0 0.0
        %686 = vmatpush1.msra.mxu0 0.0
        %687 = vmatprep.subr.mxu0 0.0
        %688 = vmatpush1.msra.mxu0 0.0
        %689 = vmatprep.subr.mxu0 0.0
        %690 = vmatpush1.msra.mxu0 0.0
        %691 = vmatprep.subr.mxu0 0.0
        %692 = vmatpush1.msra.mxu0 0.0
        %693 = vmatprep.subr.mxu0 0.0
        %694 = vmatpush1.msra.mxu0 0.0
        %695 = vmatprep.subr.mxu0 0.0
        %696 = vmatpush1.msra.mxu0 0.0
        %697 = vmatprep.subr.mxu0 0.0
        %698 = vmatpush1.msra.mxu0 0.0
        %699 = vmatprep.subr.mxu0 0.0
        %700 = vmatpush1.msra.mxu0 0.0
        %701 = vmatprep.subr.mxu0 0.0
        %702 = vmatpush1.msra.mxu0 0.0
        %703 = vmatprep.subr.mxu0 0.0
        %704 = vmatpush1.msra.mxu0 0.0
        %705 = vmatprep.subr.mxu0 0.0
        %706 = vmatpush1.msra.mxu0 0.0
        %707 = vmatprep.subr.mxu0 0.0
        %708 = vmatpush1.msra.mxu0 0.0
        %709 = vmatprep.subr.mxu0 0.0
        %710 = vmatpush1.msra.mxu0 0.0
        %711 = vmatprep.subr.mxu0 0.0
        %712 = vmatpush1.msra.mxu0 %v676
        %713 = vmatprep.subr.mxu0 0.0
        %714 = vmatpush2.msra.mxu0 0.0
        %715 = vmatprep.subr.mxu0 0.0
        %716 = vmatpush2.msra.mxu0 0.0
        %717 = vmatprep.subr.mxu0 0.0
        %718 = vmatpush2.msra.mxu0 0.0
        %719 = vmatprep.subr.mxu0 0.0
        %720 = vmatpush2.msra.mxu0 0.0
        %721 = vmatprep.subr.mxu0 0.0
        %722 = vmatpush2.msra.mxu0 0.0
        %723 = vmatprep.subr.mxu0 0.0
        %724 = vmatpush2.msra.mxu0 0.0
        %725 = vmatprep.subr.mxu0 0.0
        %726 = vmatpush2.msra.mxu0 0.0
        %727 = vmatprep.subr.mxu0 0.0
        %728 = vmatpush2.msra.mxu0 0.0
        %729 = vmatprep.subr.mxu0 0.0
        %730 = vmatpush2.msra.mxu0 0.0
        %731 = vmatprep.subr.mxu0 0.0
        %732 = vmatpush2.msra.mxu0 0.0
        %733 = vmatprep.subr.mxu0 0.0
        %734 = vmatpush2.msra.mxu0 0.0
        %735 = vmatprep.subr.mxu0 0.0
        %736 = vmatpush2.msra.mxu0 0.0
        %737 = vmatprep.subr.mxu0 0.0
        %738 = vmatpush2.msra.mxu0 0.0
        %739 = vmatprep.subr.mxu0 0.0
        %740 = vmatpush2.msra.mxu0 0.0
        %741 = vmatprep.subr.mxu0 0.0
        %742 = vmatpush2.msra.mxu0 0.0
        %743 = vmatprep.subr.mxu0 0.0
        %744 = vmatpush2.msra.mxu0 0.0
        %745 = vmatprep.mubr.f32.mxu0 0.0
        %746 = vmatmul.mubr.f32.gmra.mxu0 %v679
        %v747 = vpop.f32.mrf.mxu0
        %v748 = vadd.f32 0.0, %v747
        %v749 = vpop.f32.mrf.mxu0
        %750 = vdwg.mxu0
        %752 = vrot.lane.b32.xlu0 %v748, 8
        %v753 = vpop.permute.xlu0 %752
        %vm755 = vcmask 130112
        %756 = vst.msk [vmem:[#allocation2] sm:$0xff] %vm755, %v753
        %757 = vrot.lane.b32.xlu0 %v416, 112
        %v758 = vpop.permute.xlu0 %757
        %759 = vrot.lane.b32.xlu0 %v416, 80
        %v760 = vpop.permute.xlu0 %759
        %v761 = vsel %vm423, %v758, 0
        %v763 = vsel %vm423, %v760, 0
        %765 = vmatprep.subr.mxu0 0.0
        %766 = vmatpush1.xpose.msra.mxu0 0.0
        %767 = vmatprep.subr.mxu0 0.0
        %768 = vmatpush1.xpose.msra.mxu0 0.0
        %769 = vmatprep.subr.mxu0 0.0
        %770 = vmatpush1.xpose.msra.mxu0 0.0
        %771 = vmatprep.subr.mxu0 0.0
        %772 = vmatpush1.xpose.msra.mxu0 0.0
        %773 = vmatprep.subr.mxu0 0.0
        %774 = vmatpush1.xpose.msra.mxu0 0.0
        %775 = vmatprep.subr.mxu0 0.0
        %776 = vmatpush1.xpose.msra.mxu0 0.0
        %777 = vmatprep.subr.mxu0 0.0
        %778 = vmatpush1.xpose.msra.mxu0 0.0
        %779 = vmatprep.subr.mxu0 0.0
        %780 = vmatpush1.xpose.msra.mxu0 0.0
        %781 = vmatprep.subr.mxu0 0.0
        %782 = vmatpush1.xpose.msra.mxu0 0.0
        %783 = vmatprep.subr.mxu0 0.0
        %784 = vmatpush1.xpose.msra.mxu0 0.0
        %785 = vmatprep.subr.mxu0 0.0
        %786 = vmatpush1.xpose.msra.mxu0 0.0
        %787 = vmatprep.subr.mxu0 0.0
        %788 = vmatpush1.xpose.msra.mxu0 0.0
        %789 = vmatprep.subr.mxu0 0.0
        %790 = vmatpush1.xpose.msra.mxu0 0.0
        %791 = vmatprep.subr.mxu0 0.0
        %792 = vmatpush1.xpose.msra.mxu0 0.0
        %793 = vmatprep.subr.mxu0 0.0
        %794 = vmatpush1.xpose.msra.mxu0 0.0
        %795 = vmatprep.subr.mxu0 0.0
        %796 = vmatpush1.xpose.msra.mxu0 %v763
        %797 = vmatprep.subr.mxu0 0.0
        %798 = vmatpush2.xpose.msra.mxu0 0.0
        %799 = vmatprep.subr.mxu0 0.0
        %800 = vmatpush2.xpose.msra.mxu0 0.0
        %801 = vmatprep.subr.mxu0 0.0
        %802 = vmatpush2.xpose.msra.mxu0 0.0
        %803 = vmatprep.subr.mxu0 0.0
        %804 = vmatpush2.xpose.msra.mxu0 0.0
        %805 = vmatprep.subr.mxu0 0.0
        %806 = vmatpush2.xpose.msra.mxu0 0.0
        %807 = vmatprep.subr.mxu0 0.0
        %808 = vmatpush2.xpose.msra.mxu0 0.0
        %809 = vmatprep.subr.mxu0 0.0
        %810 = vmatpush2.xpose.msra.mxu0 0.0
        %811 = vmatprep.subr.mxu0 0.0
        %812 = vmatpush2.xpose.msra.mxu0 0.0
        %813 = vmatprep.subr.mxu0 0.0
        %814 = vmatpush2.xpose.msra.mxu0 0.0
        %815 = vmatprep.subr.mxu0 0.0
        %816 = vmatpush2.xpose.msra.mxu0 0.0
        %817 = vmatprep.subr.mxu0 0.0
        %818 = vmatpush2.xpose.msra.mxu0 0.0
        %819 = vmatprep.subr.mxu0 0.0
        %820 = vmatpush2.xpose.msra.mxu0 0.0
        %821 = vmatprep.subr.mxu0 0.0
        %822 = vmatpush2.xpose.msra.mxu0 0.0
        %823 = vmatprep.subr.mxu0 0.0
        %824 = vmatpush2.xpose.msra.mxu0 0.0
        %825 = vmatprep.subr.mxu0 0.0
        %826 = vmatpush2.xpose.msra.mxu0 0.0
        %827 = vmatprep.subr.mxu0 0.0
        %828 = vmatpush2.xpose.msra.mxu0 0.0
        %829 = vmatprep.mubr.f32.mxu0 0.0
        %830 = vmatmul.mubr.f32.gmra.mxu0 %v761
        %v831 = vpop.f32.mrf.mxu0
        %v832 = vadd.f32 %v419, %v831
        %v833 = vpop.f32.mrf.mxu0
        %834 = vdwg.mxu0
        %v835 = vsel %vm423, %v832, -inf
        %836 = vmax.xlane.f32.xlu0 %v835
        %v837 = vpop.xlane.xlu0 %836
        %v838 = vsub.f32 %v832, %v837
        %v839 = vmul.f32 %v838, 1.442695
        %v840 = vpow.pop %v839
        %v841 = vsel %vm423, %v840, 0.0
        %842 = vadd.xlane.f32.xlu0 %v841
        %v843 = vpop.xlane.xlu0 %842
        %v844 = vrcp.pop %v843
        %v845 = vmul.f32 %v840, %v844
        %846 = vrot.lane.b32.xlu0 %v416, 48
        %v847 = vpop.permute.xlu0 %846
        %v850 = vsel %vm423, %v845, 0
        %852 = vmatprep.subr.mxu0 0.0
        %853 = vmatpush1.msra.mxu0 0.0
        %854 = vmatprep.subr.mxu0 0.0
        %855 = vmatpush1.msra.mxu0 0.0
        %856 = vmatprep.subr.mxu0 0.0
        %857 = vmatpush1.msra.mxu0 0.0
        %858 = vmatprep.subr.mxu0 0.0
        %859 = vmatpush1.msra.mxu0 0.0
        %860 = vmatprep.subr.mxu0 0.0
        %861 = vmatpush1.msra.mxu0 0.0
        %862 = vmatprep.subr.mxu0 0.0
        %863 = vmatpush1.msra.mxu0 0.0
        %864 = vmatprep.subr.mxu0 0.0
        %865 = vmatpush1.msra.mxu0 0.0
        %866 = vmatprep.subr.mxu0 0.0
        %867 = vmatpush1.msra.mxu0 0.0
        %868 = vmatprep.subr.mxu0 0.0
        %869 = vmatpush1.msra.mxu0 0.0
        %870 = vmatprep.subr.mxu0 0.0
        %871 = vmatpush1.msra.mxu0 0.0
        %872 = vmatprep.subr.mxu0 0.0
        %873 = vmatpush1.msra.mxu0 0.0
        %874 = vmatprep.subr.mxu0 0.0
        %875 = vmatpush1.msra.mxu0 0.0
        %876 = vmatprep.subr.mxu0 0.0
        %877 = vmatpush1.msra.mxu0 0.0
        %878 = vmatprep.subr.mxu0 0.0
        %879 = vmatpush1.msra.mxu0 0.0
        %880 = vmatprep.subr.mxu0 0.0
        %881 = vmatpush1.msra.mxu0 0.0
        %882 = vmatprep.subr.mxu0 0.0
        %883 = vmatpush1.msra.mxu0 %v847
        %884 = vmatprep.subr.mxu0 0.0
        %885 = vmatpush2.msra.mxu0 0.0
        %886 = vmatprep.subr.mxu0 0.0
        %887 = vmatpush2.msra.mxu0 0.0
        %888 = vmatprep.subr.mxu0 0.0
        %889 = vmatpush2.msra.mxu0 0.0
        %890 = vmatprep.subr.mxu0 0.0
        %891 = vmatpush2.msra.mxu0 0.0
        %892 = vmatprep.subr.mxu0 0.0
        %893 = vmatpush2.msra.mxu0 0.0
        %894 = vmatprep.subr.mxu0 0.0
        %895 = vmatpush2.msra.mxu0 0.0
        %896 = vmatprep.subr.mxu0 0.0
        %897 = vmatpush2.msra.mxu0 0.0
        %898 = vmatprep.subr.mxu0 0.0
        %899 = vmatpush2.msra.mxu0 0.0
        %900 = vmatprep.subr.mxu0 0.0
        %901 = vmatpush2.msra.mxu0 0.0
        %902 = vmatprep.subr.mxu0 0.0
        %903 = vmatpush2.msra.mxu0 0.0
        %904 = vmatprep.subr.mxu0 0.0
        %905 = vmatpush2.msra.mxu0 0.0
        %906 = vmatprep.subr.mxu0 0.0
        %907 = vmatpush2.msra.mxu0 0.0
        %908 = vmatprep.subr.mxu0 0.0
        %909 = vmatpush2.msra.mxu0 0.0
        %910 = vmatprep.subr.mxu0 0.0
        %911 = vmatpush2.msra.mxu0 0.0
        %912 = vmatprep.subr.mxu0 0.0
        %913 = vmatpush2.msra.mxu0 0.0
        %914 = vmatprep.subr.mxu0 0.0
        %915 = vmatpush2.msra.mxu0 0.0
        %916 = vmatprep.mubr.f32.mxu0 0.0
        %917 = vmatmul.mubr.f32.gmra.mxu0 %v850
        %v918 = vpop.f32.mrf.mxu0
        %v919 = vadd.f32 0.0, %v918
        %v920 = vpop.f32.mrf.mxu0
        %921 = vdwg.mxu0
        %923 = vrot.lane.b32.xlu0 %v919, 16
        %v924 = vpop.permute.xlu0 %923
        %vm926 = vcmask 195712
        %927 = vst.msk [vmem:[#allocation2] sm:$0xff] %vm926, %v924
        %928 = vrot.lane.b32.xlu0 %v416, 104
        %v929 = vpop.permute.xlu0 %928
        %930 = vrot.lane.b32.xlu0 %v416, 72
        %v931 = vpop.permute.xlu0 %930
        %v932 = vsel %vm423, %v929, 0
        %v934 = vsel %vm423, %v931, 0
        %936 = vmatprep.subr.mxu0 0.0
        %937 = vmatpush1.xpose.msra.mxu0 0.0
        %938 = vmatprep.subr.mxu0 0.0
        %939 = vmatpush1.xpose.msra.mxu0 0.0
        %940 = vmatprep.subr.mxu0 0.0
        %941 = vmatpush1.xpose.msra.mxu0 0.0
        %942 = vmatprep.subr.mxu0 0.0
        %943 = vmatpush1.xpose.msra.mxu0 0.0
        %944 = vmatprep.subr.mxu0 0.0
        %945 = vmatpush1.xpose.msra.mxu0 0.0
        %946 = vmatprep.subr.mxu0 0.0
        %947 = vmatpush1.xpose.msra.mxu0 0.0
        %948 = vmatprep.subr.mxu0 0.0
        %949 = vmatpush1.xpose.msra.mxu0 0.0
        %950 = vmatprep.subr.mxu0 0.0
        %951 = vmatpush1.xpose.msra.mxu0 0.0
        %952 = vmatprep.subr.mxu0 0.0
        %953 = vmatpush1.xpose.msra.mxu0 0.0
        %954 = vmatprep.subr.mxu0 0.0
        %955 = vmatpush1.xpose.msra.mxu0 0.0
        %956 = vmatprep.subr.mxu0 0.0
        %957 = vmatpush1.xpose.msra.mxu0 0.0
        %958 = vmatprep.subr.mxu0 0.0
        %959 = vmatpush1.xpose.msra.mxu0 0.0
        %960 = vmatprep.subr.mxu0 0.0
        %961 = vmatpush1.xpose.msra.mxu0 0.0
        %962 = vmatprep.subr.mxu0 0.0
        %963 = vmatpush1.xpose.msra.mxu0 0.0
        %964 = vmatprep.subr.mxu0 0.0
        %965 = vmatpush1.xpose.msra.mxu0 0.0
        %966 = vmatprep.subr.mxu0 0.0
        %967 = vmatpush1.xpose.msra.mxu0 %v934
        %968 = vmatprep.subr.mxu0 0.0
        %969 = vmatpush2.xpose.msra.mxu0 0.0
        %970 = vmatprep.subr.mxu0 0.0
        %971 = vmatpush2.xpose.msra.mxu0 0.0
        %972 = vmatprep.subr.mxu0 0.0
        %973 = vmatpush2.xpose.msra.mxu0 0.0
        %974 = vmatprep.subr.mxu0 0.0
        %975 = vmatpush2.xpose.msra.mxu0 0.0
        %976 = vmatprep.subr.mxu0 0.0
        %977 = vmatpush2.xpose.msra.mxu0 0.0
        %978 = vmatprep.subr.mxu0 0.0
        %979 = vmatpush2.xpose.msra.mxu0 0.0
        %980 = vmatprep.subr.mxu0 0.0
        %981 = vmatpush2.xpose.msra.mxu0 0.0
        %982 = vmatprep.subr.mxu0 0.0
        %983 = vmatpush2.xpose.msra.mxu0 0.0
        %984 = vmatprep.subr.mxu0 0.0
        %985 = vmatpush2.xpose.msra.mxu0 0.0
        %986 = vmatprep.subr.mxu0 0.0
        %987 = vmatpush2.xpose.msra.mxu0 0.0
        %988 = vmatprep.subr.mxu0 0.0
        %989 = vmatpush2.xpose.msra.mxu0 0.0
        %990 = vmatprep.subr.mxu0 0.0
        %991 = vmatpush2.xpose.msra.mxu0 0.0
        %992 = vmatprep.subr.mxu0 0.0
        %993 = vmatpush2.xpose.msra.mxu0 0.0
        %994 = vmatprep.subr.mxu0 0.0
        %995 = vmatpush2.xpose.msra.mxu0 0.0
        %996 = vmatprep.subr.mxu0 0.0
        %997 = vmatpush2.xpose.msra.mxu0 0.0
        %998 = vmatprep.subr.mxu0 0.0
        %999 = vmatpush2.xpose.msra.mxu0 0.0
        %1000 = vmatprep.mubr.f32.mxu0 0.0
        %1001 = vmatmul.mubr.f32.gmra.mxu0 %v932
        %v1002 = vpop.f32.mrf.mxu0
        %v1003 = vadd.f32 %v419, %v1002
        %v1004 = vpop.f32.mrf.mxu0
        %1005 = vdwg.mxu0
        %v1006 = vsel %vm423, %v1003, -inf
        %1007 = vmax.xlane.f32.xlu0 %v1006
        %v1008 = vpop.xlane.xlu0 %1007
        %v1009 = vsub.f32 %v1003, %v1008
        %v1010 = vmul.f32 %v1009, 1.442695
        %v1011 = vpow.pop %v1010
        %v1012 = vsel %vm423, %v1011, 0.0
        %1013 = vadd.xlane.f32.xlu0 %v1012
        %v1014 = vpop.xlane.xlu0 %1013
        %v1015 = vrcp.pop %v1014
        %v1016 = vmul.f32 %v1011, %v1015
        %1017 = vrot.lane.b32.xlu0 %v416, 40
        %v1018 = vpop.permute.xlu0 %1017
        %v1021 = vsel %vm423, %v1016, 0
        %1023 = vmatprep.subr.mxu0 0.0
        %1024 = vmatpush1.msra.mxu0 0.0
        %1025 = vmatprep.subr.mxu0 0.0
        %1026 = vmatpush1.msra.mxu0 0.0
        %1027 = vmatprep.subr.mxu0 0.0
        %1028 = vmatpush1.msra.mxu0 0.0
        %1029 = vmatprep.subr.mxu0 0.0
        %1030 = vmatpush1.msra.mxu0 0.0
        %1031 = vmatprep.subr.mxu0 0.0
        %1032 = vmatpush1.msra.mxu0 0.0
        %1033 = vmatprep.subr.mxu0 0.0
        %1034 = vmatpush1.msra.mxu0 0.0
        %1035 = vmatprep.subr.mxu0 0.0
        %1036 = vmatpush1.msra.mxu0 0.0
        %1037 = vmatprep.subr.mxu0 0.0
        %1038 = vmatpush1.msra.mxu0 0.0
        %1039 = vmatprep.subr.mxu0 0.0
        %1040 = vmatpush1.msra.mxu0 0.0
        %1041 = vmatprep.subr.mxu0 0.0
        %1042 = vmatpush1.msra.mxu0 0.0
        %1043 = vmatprep.subr.mxu0 0.0
        %1044 = vmatpush1.msra.mxu0 0.0
        %1045 = vmatprep.subr.mxu0 0.0
        %1046 = vmatpush1.msra.mxu0 0.0
        %1047 = vmatprep.subr.mxu0 0.0
        %1048 = vmatpush1.msra.mxu0 0.0
        %1049 = vmatprep.subr.mxu0 0.0
        %1050 = vmatpush1.msra.mxu0 0.0
        %1051 = vmatprep.subr.mxu0 0.0
        %1052 = vmatpush1.msra.mxu0 0.0
        %1053 = vmatprep.subr.mxu0 0.0
        %1054 = vmatpush1.msra.mxu0 %v1018
        %1055 = vmatprep.subr.mxu0 0.0
        %1056 = vmatpush2.msra.mxu0 0.0
        %1057 = vmatprep.subr.mxu0 0.0
        %1058 = vmatpush2.msra.mxu0 0.0
        %1059 = vmatprep.subr.mxu0 0.0
        %1060 = vmatpush2.msra.mxu0 0.0
        %1061 = vmatprep.subr.mxu0 0.0
        %1062 = vmatpush2.msra.mxu0 0.0
        %1063 = vmatprep.subr.mxu0 0.0
        %1064 = vmatpush2.msra.mxu0 0.0
        %1065 = vmatprep.subr.mxu0 0.0
        %1066 = vmatpush2.msra.mxu0 0.0
        %1067 = vmatprep.subr.mxu0 0.0
        %1068 = vmatpush2.msra.mxu0 0.0
        %1069 = vmatprep.subr.mxu0 0.0
        %1070 = vmatpush2.msra.mxu0 0.0
        %1071 = vmatprep.subr.mxu0 0.0
        %1072 = vmatpush2.msra.mxu0 0.0
        %1073 = vmatprep.subr.mxu0 0.0
        %1074 = vmatpush2.msra.mxu0 0.0
        %1075 = vmatprep.subr.mxu0 0.0
        %1076 = vmatpush2.msra.mxu0 0.0
        %1077 = vmatprep.subr.mxu0 0.0
        %1078 = vmatpush2.msra.mxu0 0.0
        %1079 = vmatprep.subr.mxu0 0.0
        %1080 = vmatpush2.msra.mxu0 0.0
        %1081 = vmatprep.subr.mxu0 0.0
        %1082 = vmatpush2.msra.mxu0 0.0
        %1083 = vmatprep.subr.mxu0 0.0
        %1084 = vmatpush2.msra.mxu0 0.0
        %1085 = vmatprep.subr.mxu0 0.0
        %1086 = vmatpush2.msra.mxu0 0.0
        %1087 = vmatprep.mubr.f32.mxu0 0.0
        %1088 = vmatmul.mubr.f32.gmra.mxu0 %v1021
        %v1089 = vpop.f32.mrf.mxu0
        %v1090 = vadd.f32 0.0, %v1089
        %v1091 = vpop.f32.mrf.mxu0
        %1092 = vdwg.mxu0
        %1094 = vrot.lane.b32.xlu0 %v1090, 24
        %v1095 = vpop.permute.xlu0 %1094
        %vm1097 = vcmask 261312
        %1098 = vst.msk [vmem:[#allocation2] sm:$0xff] %vm1097, %v1095
        %v1099 = vld [vmem:[#allocation2] sm:$0xff]
        %v1100 = vld [vmem:[#allocation9] sm:$0xff]
        %v1101 = vld [vmem:[#allocation9 + $0x8] sm:$0xff]
        %v1102 = vld [vmem:[#allocation9 + $0x10] sm:$0xff]
        %v1103 = vld [vmem:[#allocation9 + $0x18] sm:$0xff]
        %v1104 = vld [vmem:[%s5] sm:$0x1]
        %v1106 = vlaneseq
        %v1107 = vshrl.u32 %v1106, 7
        %v1108 = vsub.s32 0, %v1107
        %v1109 = vrot.slane %v1104, %v1108
        %v1112 = vsel %vm345, %v1099, 0
        %1114 = vmatprep.subr.mxu0 0.0
        %1115 = vmatpush1.msra.mxu0 0.0
        %1116 = vmatprep.subr.mxu0 0.0
        %1117 = vmatpush1.msra.mxu0 0.0
        %1118 = vmatprep.subr.mxu0 0.0
        %1119 = vmatpush1.msra.mxu0 0.0
        %1120 = vmatprep.subr.mxu0 0.0
        %1121 = vmatpush1.msra.mxu0 0.0
        %1122 = vmatprep.subr.mxu0 0.0
        %1123 = vmatpush1.msra.mxu0 0.0
        %1124 = vmatprep.subr.mxu0 0.0
        %1125 = vmatpush1.msra.mxu0 0.0
        %1126 = vmatprep.subr.mxu0 0.0
        %1127 = vmatpush1.msra.mxu0 0.0
        %1128 = vmatprep.subr.mxu0 0.0
        %1129 = vmatpush1.msra.mxu0 0.0
        %1130 = vmatprep.subr.mxu0 0.0
        %1131 = vmatpush1.msra.mxu0 0.0
        %1132 = vmatprep.subr.mxu0 0.0
        %1133 = vmatpush1.msra.mxu0 0.0
        %1134 = vmatprep.subr.mxu0 0.0
        %1135 = vmatpush1.msra.mxu0 0.0
        %1136 = vmatprep.subr.mxu0 0.0
        %1137 = vmatpush1.msra.mxu0 0.0
        %1138 = vmatprep.subr.mxu0 0.0
        %1139 = vmatpush1.msra.mxu0 %v1103
        %1140 = vmatprep.subr.mxu0 0.0
        %1141 = vmatpush1.msra.mxu0 %v1102
        %1142 = vmatprep.subr.mxu0 0.0
        %1143 = vmatpush1.msra.mxu0 %v1101
        %1144 = vmatprep.subr.mxu0 0.0
        %1145 = vmatpush1.msra.mxu0 %v1100
        %1146 = vmatprep.subr.mxu0 0.0
        %1147 = vmatpush2.msra.mxu0 0.0
        %1148 = vmatprep.subr.mxu0 0.0
        %1149 = vmatpush2.msra.mxu0 0.0
        %1150 = vmatprep.subr.mxu0 0.0
        %1151 = vmatpush2.msra.mxu0 0.0
        %1152 = vmatprep.subr.mxu0 0.0
        %1153 = vmatpush2.msra.mxu0 0.0
        %1154 = vmatprep.subr.mxu0 0.0
        %1155 = vmatpush2.msra.mxu0 0.0
        %1156 = vmatprep.subr.mxu0 0.0
        %1157 = vmatpush2.msra.mxu0 0.0
        %1158 = vmatprep.subr.mxu0 0.0
        %1159 = vmatpush2.msra.mxu0 0.0
        %1160 = vmatprep.subr.mxu0 0.0
        %1161 = vmatpush2.msra.mxu0 0.0
        %1162 = vmatprep.subr.mxu0 0.0
        %1163 = vmatpush2.msra.mxu0 0.0
        %1164 = vmatprep.subr.mxu0 0.0
        %1165 = vmatpush2.msra.mxu0 0.0
        %1166 = vmatprep.subr.mxu0 0.0
        %1167 = vmatpush2.msra.mxu0 0.0
        %1168 = vmatprep.subr.mxu0 0.0
        %1169 = vmatpush2.msra.mxu0 0.0
        %1170 = vmatprep.subr.mxu0 0.0
        %1171 = vmatpush2.msra.mxu0 0.0
        %1172 = vmatprep.subr.mxu0 0.0
        %1173 = vmatpush2.msra.mxu0 0.0
        %1174 = vmatprep.subr.mxu0 0.0
        %1175 = vmatpush2.msra.mxu0 0.0
        %1176 = vmatprep.subr.mxu0 0.0
        %1177 = vmatpush2.msra.mxu0 0.0
        %1178 = vmatprep.mubr.f32.mxu0 0.0
        %1179 = vmatmul.mubr.f32.gmra.mxu0 %v1112
        %v1180 = vpop.f32.mrf.mxu0
        %v1181 = vadd.f32 %v1109, %v1180
        %v1182 = vpop.f32.mrf.mxu0
        %1183 = vdwg.mxu0
        %1184 = vst.msk [vmem:[%s332] sm:$0xff] %vm345, %v1181
        %s1185 = sand.u32 %s171, 1
        %s1186 = scalar_lea.sflag [#allocation5], %s1185
        %s1187 = sand.u32 %s171, 1
        %s1188 = smul.addr %s1187, 8
        %s1189 = scalar_lea.vmem [#allocation11], %s1188
        // Predicated region
        $region61: #{tpu_custom_call.1} parent=43 // pred_check
          %p1190 = pneg %p181
        $region62: #{tpu_custom_call.1} parent=43 // pred_check_branch
          %1192 = sbr.rel (%p1190) target = $region64
        $region63: #{tpu_custom_call.1} parent=43 // pred_region
          %s1194 = ssub.s32 128, 128
          %1195 = vsyncadd %s1186, %s1194
          %s1196 = smul.addr %s27, 128
          %s1197 = scalar_lea.hbm %s6, %s1196
          %s1199 = sshll.u32 %s1189, 4
          %s1200 = int_to_ptr.vmem [resolvable:$true] %s1199
          %1202 = dma.vmem_to_hbm [thread:$0]  %s1200, 128, %s1197, %s1186
        $region64: #{tpu_custom_call.1} parent=43 // pred_fallthru
          _
      $region44: #{tpu_custom_call.1} parent=5 // pred_fallthru
        _
      %p1203 = scmp.le.s32.totalorder 2, %s22
      // Predicated region
      $region65: #{tpu_custom_call.1} parent=5 // pred_check
        %p1204 = pneg %p1203
      $region66: #{tpu_custom_call.1} parent=5 // pred_check_branch
        %1206 = sbr.rel (%p1204) target = $region68
      $region67: #{tpu_custom_call.1} parent=5 // pred_region
        %s1207 = ssub.s32 %s22, 2
        // Predicated region
        $region69: #{tpu_custom_call.1} parent=67 // pred_check
          %p1208 = pneg %p187
        $region70: #{tpu_custom_call.1} parent=67 // pred_check_branch
          %1210 = sbr.rel (%p1208) target = $region72
        $region71: #{tpu_custom_call.1} parent=67 // pred_region
          %s1211 = sand.u32 %s172, 1
          %s1212 = scalar_lea.sflag [#allocation5], %s1211
          %s1213 = sand.u32 %s172, 1
          %s1214 = smul.addr %s1213, 8
          %s1215 = scalar_lea.vmem [#allocation11], %s1214
          %1216 = dma.done %s1212, 128
        $region72: #{tpu_custom_call.1} parent=67 // pred_fallthru
          _
      $region68: #{tpu_custom_call.1} parent=5 // pred_fallthru
        _
    $region6: #{tpu_custom_call.1} parent=1 // loop_footer
      %s26 = sadd.s32 1, %s22
    $region7: #{tpu_custom_call.1} parent=1 // loop_footer_branch
      %21 = sbr.rel target = $region3
    $region8: #{tpu_custom_call.1} parent=1 // loop_exit
      _
    %1217 = vsyncpa [#allocation4], 1
    %s1218 = scalar_lea.sflag [#allocation4], 1
    %1219 = vsyncpa %s1218, 1
    %1220 = vsyncpa [#allocation7], 1
    %s1221 = scalar_lea.sflag [#allocation7], 1
    %1222 = vsyncpa %s1221, 1
    %1223 = vsyncpa [#allocation10], 1
    %1224 = vsyncpa [#allocation5], 1
    %s1225 = scalar_lea.sflag [#allocation5], 1
    %1226 = vsyncpa %s1225, 1

</llo_original>
